<compile_context>
chip_gen: v6e
topology: v6e:2x2x1
jax: 0.10.0
libtpu: 0.0.40
codegen_flags: <defaults>
</compile_context>

<pallas_src>
import numpy as np
import jax
import jax.numpy as jnp
from jax.experimental import pallas as pl
from jax.experimental.pallas import tpu as pltpu


def dep_kernel(sen_ref, win_ref, arg_ref, mask_ref, w_ref, b_ref, out_ref):
    sen = sen_ref[0]        # [L, H]   bf16
    win = win_ref[0]        # [S8, L]  bf16 (mean-pool weights, 1/count folded)
    arg = arg_ref[0]        # [A128,H] bf16
    mask = mask_ref[0]      # [S8, A128] f32
    w = w_ref[...]          # [H, D]   bf16 (resident)
    bias = b_ref[...]       # [1, D]   f32  (resident)

    # --- span mean pooling: [S8, L] @ [L, H] -> [S8, H] (f32 accumulate) ---
    span = jnp.dot(win, sen, preferred_element_type=jnp.float32)

    # --- classifier nn.Linear(768, 128) on spans and schema args ---
    span_p = jnp.dot(span.astype(jnp.bfloat16), w,
                     preferred_element_type=jnp.float32) + bias      # [S8, D]
    arg_p = jnp.dot(arg, w, preferred_element_type=jnp.float32) + bias  # [A128, D]

    # --- similarity 'ou': -||x - y||^2 = 2 x.y - ||x||^2 - ||y||^2 (MXU) ---
    gram = jax.lax.dot_general(span_p, arg_p, (((1,), (1,)), ((), ())),
                               preferred_element_type=jnp.float32)   # [S8, A128]
    s2 = jnp.sum(span_p * span_p, axis=-1, keepdims=True)            # [S8, 1]
    a2 = jnp.sum(arg_p * arg_p, axis=-1)[None, :]                    # [1, A128]

    # --- mask_type multiply (mask=True branch); zeroes the padded region ---
    out_ref[0] = (2.0 * gram - s2 - a2) * mask


def dep_forward_pallas(sen_emb, win_mask, arg_emb, W, bias, mask_type):
    B, L, H = sen_emb.shape
    _, S_pad, _ = win_mask.shape
    _, A_pad, _ = arg_emb.shape
    D = W.shape[1]
    return pl.pallas_call(
        dep_kernel,
        out_shape=jax.ShapeDtypeStruct((B, S_pad, A_pad), jnp.float32),
        grid_spec=pltpu.PrefetchScalarGridSpec(
            num_scalar_prefetch=0,
            grid=(B,),
            in_specs=[
                pl.BlockSpec((1, L, H), lambda b: (b, 0, 0)),        # sen_emb
                pl.BlockSpec((1, S_pad, L), lambda b: (b, 0, 0)),    # win_mask
                pl.BlockSpec((1, A_pad, H), lambda b: (b, 0, 0)),    # arg_emb
                pl.BlockSpec((1, S_pad, A_pad), lambda b: (b, 0, 0)),# mask_type
                pl.BlockSpec((H, D), lambda b: (0, 0)),              # W (resident)
                pl.BlockSpec((1, D), lambda b: (0, 0)),              # b (resident)
            ],
            out_specs=pl.BlockSpec((1, S_pad, A_pad), lambda b: (b, 0, 0)),
        ),
        compiler_params=pltpu.CompilerParams(
            dimension_semantics=("parallel",)),   # v7x: split examples across TCs
    )(sen_emb, win_mask, arg_emb, mask_type, W, bias)


def dep_forward_ref(sen_emb, win_mask, arg_emb, W, bias, mask_type):
    """Plain-JAX reference: same bf16 operands / f32 accumulation, naive distance."""
    span = jnp.einsum('bsl,blh->bsh', win_mask, sen_emb,
                      preferred_element_type=jnp.float32)
    span_p = jnp.einsum('bsh,hd->bsd', span.astype(jnp.bfloat16), W,
                        preferred_element_type=jnp.float32) + bias
    arg_p = jnp.einsum('bah,hd->bad', arg_emb, W,
                       preferred_element_type=jnp.float32) + bias
    diff = arg_p[:, None, :, :] - span_p[:, :, None, :]
    return -jnp.sum(diff * diff, axis=-1) * mask_type


def build_window_masks(span_offsets, B, S_pad, L, offset):
    """Replicates sen_emb[max(0, i0 - offset): i_last + 1 + offset].mean(0);
    the 1/window_size normalization is folded into the pooling weights."""
    win = np.zeros((B, S_pad, L), dtype=np.float32)
    for bi in range(B):
        for t1, (i0, i1) in enumerate(span_offsets[bi]):
            lo = max(0, i0 - offset)
            hi = min(L, i1 + 1 + offset)
            if hi <= lo:                 # empty slice -> fall back to sen_emb[0]
                win[bi, t1, 0] = 1.0
            else:
                win[bi, t1, lo:hi] = 1.0 / float(hi - lo)
    return jnp.asarray(win)


if __name__ == "__main__":
    key = jax.random.PRNGKey(0)
    k_sen, k_arg, k_w, k_b, k_m = jax.random.split(key, 5)

    B = 4                        # examples per pallas_call (grid)
    L, H, D = 64, 768, 128       # seq len, encoder hidden, classifier out
    S, A = 4, 8                  # real num cal_args (spans), real num schema args
    S_PAD, A_PAD = 8, 128        # sublane / lane padded sizes
    OFFSET = 10

    # "Encoder" outputs, modeled as deterministic random inputs.
    sen_emb = jax.random.normal(k_sen, (B, L, H), dtype=jnp.float32)
    arg_emb_real = jax.random.normal(k_arg, (B, A, H), dtype=jnp.float32)

    # nn.Linear(768, 128) parameters (weight=True path), deterministic init.
    W = jax.random.normal(k_w, (H, D), dtype=jnp.float32) * 0.02
    bias = jax.random.normal(k_b, (1, D), dtype=jnp.float32) * 0.02

    # cal_args offsets -> mean-pooling windows (normalization folded in).
    span_offsets = [
        [(0, 2), (5, 7), (12, 15), (20, 40)],
        [(1, 1), (8, 10), (30, 33), (50, 63)],
        [(0, 0), (3, 9), (17, 20), (40, 45)],
        [(2, 4), (11, 12), (25, 31), (55, 60)],
    ]
    win_mask = build_window_masks(span_offsets, B, S_PAD, L, OFFSET)

    # mask_type (mask=True branch): deterministic 0/1 pattern, padded region = 0.
    mask_real = (jax.random.uniform(k_m, (B, S, A)) > 0.3).astype(jnp.float32)
    mask_type = jnp.zeros((B, S_PAD, A_PAD), jnp.float32).at[:, :S, :A].set(mask_real)

    # Pad schema args to a lane-dense 128; padded rows are zero and masked out.
    arg_emb = jnp.zeros((B, A_PAD, H), jnp.float32).at[:, :A, :].set(arg_emb_real)

    # bf16 matmul operands; accumulation stays f32 in-kernel.
    sen_bf = sen_emb.astype(jnp.bfloat16)
    win_bf = win_mask.astype(jnp.bfloat16)
    arg_bf = arg_emb.astype(jnp.bfloat16)
    W_bf = W.astype(jnp.bfloat16)

    out = dep_forward_pallas(sen_bf, win_bf, arg_bf, W_bf, bias, mask_type)
    out = jax.block_until_ready(out)

    ref = dep_forward_ref(sen_bf, win_bf, arg_bf, W_bf, bias, mask_type)
    np.testing.assert_allclose(np.asarray(out), np.asarray(ref),
                               rtol=1e-3, atol=1e-2)

    # real (unpadded) logits, one [S, A] block per example
    _ = out[:, :S, :A]

    print("KERNEL_OK")
</pallas_src>

<mosaic_0001>
module attributes {stable_mosaic.version = 11 : i64} {
  func.func @dep_kernel(%arg0: i32, %arg1: memref<1x64x768xbf16, #tpu.memory_space<vmem>>, %arg2: memref<1x8x64xbf16, #tpu.memory_space<vmem>>, %arg3: memref<1x128x768xbf16, #tpu.memory_space<vmem>>, %arg4: memref<1x8x128xf32, #tpu.memory_space<vmem>>, %arg5: memref<768x128xbf16, #tpu.memory_space<vmem>>, %arg6: memref<1x128xf32, #tpu.memory_space<vmem>>, %arg7: memref<1x8x128xf32, #tpu.memory_space<vmem>>) attributes {dimension_semantics = [#tpu.dimension_semantics<parallel>], iteration_bounds = array<i64: 4>, scalar_prefetch = 0 : i64, scratch_operands = 0 : i64, tpu.core_type = #tpu.core_type<tc>, window_params = [{transform_indices = @transform_0, window_bounds = array<i64: 1, 64, 768>}, {transform_indices = @transform_1, window_bounds = array<i64: 1, 8, 64>}, {transform_indices = @transform_2, window_bounds = array<i64: 1, 128, 768>}, {transform_indices = @transform_3, window_bounds = array<i64: 1, 8, 128>}, {pipeline_mode = #tpu.pipeline_mode<synchronous>, transform_indices = @transform_4, window_bounds = array<i64: 768, 128>}, {pipeline_mode = #tpu.pipeline_mode<synchronous>, transform_indices = @transform_5, window_bounds = array<i64: 1, 128>}, {transform_indices = @transform_6, window_bounds = array<i64: 1, 8, 128>}]} {
    %c0 = arith.constant 0 : index
    %c0_0 = arith.constant 0 : index
    %c0_1 = arith.constant 0 : index
    %0 = vector.load %arg1[%c0, %c0_0, %c0_1] : memref<1x64x768xbf16, #tpu.memory_space<vmem>>, vector<1x64x768xbf16>
    %1 = vector.shape_cast %0 : vector<1x64x768xbf16> to vector<64x768xbf16>
    %c0_2 = arith.constant 0 : index
    %c0_3 = arith.constant 0 : index
    %c0_4 = arith.constant 0 : index
    %2 = vector.load %arg2[%c0_2, %c0_3, %c0_4] : memref<1x8x64xbf16, #tpu.memory_space<vmem>>, vector<1x8x64xbf16>
    %3 = vector.shape_cast %2 : vector<1x8x64xbf16> to vector<8x64xbf16>
    %c0_5 = arith.constant 0 : index
    %c0_6 = arith.constant 0 : index
    %c0_7 = arith.constant 0 : index
    %4 = vector.load %arg3[%c0_5, %c0_6, %c0_7] : memref<1x128x768xbf16, #tpu.memory_space<vmem>>, vector<1x128x768xbf16>
    %5 = vector.shape_cast %4 : vector<1x128x768xbf16> to vector<128x768xbf16>
    %c0_8 = arith.constant 0 : index
    %c0_9 = arith.constant 0 : index
    %c0_10 = arith.constant 0 : index
    %6 = vector.load %arg4[%c0_8, %c0_9, %c0_10] : memref<1x8x128xf32, #tpu.memory_space<vmem>>, vector<1x8x128xf32>
    %7 = vector.shape_cast %6 : vector<1x8x128xf32> to vector<8x128xf32>
    %c0_11 = arith.constant 0 : index
    %c0_12 = arith.constant 0 : index
    %8 = vector.load %arg5[%c0_11, %c0_12] : memref<768x128xbf16, #tpu.memory_space<vmem>>, vector<768x128xbf16>
    %c0_13 = arith.constant 0 : index
    %c0_14 = arith.constant 0 : index
    %9 = vector.load %arg6[%c0_13, %c0_14] : memref<1x128xf32, #tpu.memory_space<vmem>>, vector<1x128xf32>
    %cst = arith.constant dense<0.000000e+00> : vector<8x768xf32>
    %10 = tpu.matmul %3, %1, %cst {dimension_numbers = #tpu.dot_dimension_numbers<[1], [0], [0], [1], [0, 0, 1, 1], [], []>} : vector<8x64xbf16>, vector<64x768xbf16>, vector<8x768xf32> -> vector<8x768xf32>
    %11 = arith.truncf %10 : vector<8x768xf32> to vector<8x768xbf16>
    %cst_15 = arith.constant dense<0.000000e+00> : vector<8x128xf32>
    %12 = tpu.matmul %11, %8, %cst_15 {dimension_numbers = #tpu.dot_dimension_numbers<[1], [0], [0], [1], [0, 0, 1, 1], [], []>} : vector<8x768xbf16>, vector<768x128xbf16>, vector<8x128xf32> -> vector<8x128xf32>
    %13 = vector.broadcast %9 : vector<1x128xf32> to vector<8x128xf32>
    %14 = arith.addf %12, %13 : vector<8x128xf32>
    %cst_16 = arith.constant dense<0.000000e+00> : vector<128x128xf32>
    %15 = tpu.matmul %5, %8, %cst_16 {dimension_numbers = #tpu.dot_dimension_numbers<[1], [0], [0], [1], [0, 0, 1, 1], [], []>} : vector<128x768xbf16>, vector<768x128xbf16>, vector<128x128xf32> -> vector<128x128xf32>
    %16 = vector.broadcast %9 : vector<1x128xf32> to vector<128x128xf32>
    %17 = arith.addf %15, %16 : vector<128x128xf32>
    %cst_17 = arith.constant dense<0.000000e+00> : vector<8x128xf32>
    %18 = tpu.matmul %14, %17, %cst_17 {dimension_numbers = #tpu.dot_dimension_numbers<[1], [1], [0], [0], [0, 0, 1, 0], [], []>} : vector<8x128xf32>, vector<128x128xf32>, vector<8x128xf32> -> vector<8x128xf32>
    %19 = arith.mulf %14, %14 : vector<8x128xf32>
    %cst_18 = arith.constant dense<0.000000e+00> : vector<8xf32>
    %20 = vector.multi_reduction <add>, %19, %cst_18 [1] : vector<8x128xf32> to vector<8xf32>
    %21 = vector.shape_cast %20 : vector<8xf32> to vector<8x1xf32>
    %22 = arith.mulf %17, %17 : vector<128x128xf32>
    %cst_19 = arith.constant dense<0.000000e+00> : vector<128xf32>
    %23 = vector.multi_reduction <add>, %22, %cst_19 [1] : vector<128x128xf32> to vector<128xf32>
    %24 = vector.shape_cast %23 : vector<128xf32> to vector<1x128xf32>
    %cst_20 = arith.constant 2.000000e+00 : f32
    %25 = vector.broadcast %cst_20 : f32 to vector<8x128xf32>
    %26 = arith.mulf %25, %18 : vector<8x128xf32>
    %27 = vector.broadcast %21 : vector<8x1xf32> to vector<8x128xf32>
    %28 = arith.subf %26, %27 : vector<8x128xf32>
    %29 = vector.broadcast %24 : vector<1x128xf32> to vector<8x128xf32>
    %30 = arith.subf %28, %29 : vector<8x128xf32>
    %31 = arith.mulf %30, %7 : vector<8x128xf32>
    %c0_21 = arith.constant 0 : index
    %c0_22 = arith.constant 0 : index
    %c0_23 = arith.constant 0 : index
    %32 = vector.load %arg7[%c0_21, %c0_22, %c0_23] : memref<1x8x128xf32, #tpu.memory_space<vmem>>, vector<1x8x128xf32>
    %33 = vector.shape_cast %32 : vector<1x8x128xf32> to vector<8x128xf32>
    %34 = vector.shape_cast %31 : vector<8x128xf32> to vector<1x8x128xf32>
    tpu.vector_store %arg7[%c0_21, %c0_22, %c0_23], %34 {strides = array<i32>} : memref<1x8x128xf32, #tpu.memory_space<vmem>>, vector<1x8x128xf32>,
    return
  }
  func.func @transform_0(%arg0: i32) -> (i32, i32, i32) {
    %c0_i32 = arith.constant 0 : i32
    %c0_i32_0 = arith.constant 0 : i32
    %c0_i32_1 = arith.constant 0 : i32
    return %arg0, %c0_i32, %c0_i32_0 : i32, i32, i32
  }
  func.func @transform_1(%arg0: i32) -> (i32, i32, i32) {
    %c0_i32 = arith.constant 0 : i32
    %c0_i32_0 = arith.constant 0 : i32
    %c0_i32_1 = arith.constant 0 : i32
    return %arg0, %c0_i32, %c0_i32_0 : i32, i32, i32
  }
  func.func @transform_2(%arg0: i32) -> (i32, i32, i32) {
    %c0_i32 = arith.constant 0 : i32
    %c0_i32_0 = arith.constant 0 : i32
    %c0_i32_1 = arith.constant 0 : i32
    return %arg0, %c0_i32, %c0_i32_0 : i32, i32, i32
  }
  func.func @transform_3(%arg0: i32) -> (i32, i32, i32) {
    %c0_i32 = arith.constant 0 : i32
    %c0_i32_0 = arith.constant 0 : i32
    %c0_i32_1 = arith.constant 0 : i32
    return %arg0, %c0_i32, %c0_i32_0 : i32, i32, i32
  }
  func.func @transform_4(%arg0: i32) -> (i32, i32) {
    %c0_i32 = arith.constant 0 : i32
    %c0_i32_0 = arith.constant 0 : i32
    %c0_i32_1 = arith.constant 0 : i32
    return %c0_i32, %c0_i32_0 : i32, i32
  }
  func.func @transform_5(%arg0: i32) -> (i32, i32) {
    %c0_i32 = arith.constant 0 : i32
    %c0_i32_0 = arith.constant 0 : i32
    %c0_i32_1 = arith.constant 0 : i32
    return %c0_i32, %c0_i32_0 : i32, i32
  }
  func.func @transform_6(%arg0: i32) -> (i32, i32, i32) {
    %c0_i32 = arith.constant 0 : i32
    %c0_i32_0 = arith.constant 0 : i32
    %c0_i32_1 = arith.constant 0 : i32
    return %arg0, %c0_i32, %c0_i32_0 : i32, i32, i32
  }
}

</mosaic_0001>

<llo_original>
// kernel: tpu_custom_call.1
$region0: #{tpu_custom_call.1}
  #allocation0 [shape = 'u32[]', space=smem, size = 0x4, offset = 0x4, fixed_abs, tag = 'smem constant byte address 0x4 - core index']
  #allocation1 [shape = 'u32[144,128]{1,0:T(1,128)}', space=vmem, size = 0x12000, scoped, tag = 'internal scratch']
  %s0 = inlined_call_operand.hbm [shape: bf16[4,64,768], index: 0, kind: input, shape index: {}]
  %s1 = inlined_call_operand.hbm [shape: bf16[4,8,64], index: 1, kind: input, shape index: {}]
  %s2 = inlined_call_operand.hbm [shape: bf16[4,128,768], index: 2, kind: input, shape index: {}]
  %s3 = inlined_call_operand.hbm [shape: f32[4,8,128], index: 3, kind: input, shape index: {}]
  %s4 = inlined_call_operand.hbm [shape: bf16[768,128], index: 4, kind: input, shape index: {}]
  %s5 = inlined_call_operand.vmem [shape: f32[1,128], index: 5, kind: input, shape index: {}]
  %s6 = inlined_call_operand.hbm [shape: f32[4,8,128], index: 6, kind: output, shape index: {}]
  %s7 = sld [smem:[#allocation0]]
  $region77: #{tpu_custom_call.1} parent=0
    _
  %s9 = ssub.s32 1, %s7
  %s10 = scalar_select 0, %s9, %s7
  $region1: #{tpu_custom_call.1} parent=0
    #allocation2 [shape = 'u8[196608]{0}', space=vmem, size = 0x30000, scoped, tag = 'input window, operand 0']
    #allocation3 [shape = 's32[2]{0}', space=sflag, size = 0x8, scoped, tag = 'scoped memory for tpu_custom_call.1']
    #allocation4 [shape = 's32[2]{0}', space=sflag, size = 0x8, scoped, tag = 'scoped memory for tpu_custom_call.1']
    #allocation5 [shape = 'u8[4096]{0}', space=vmem, size = 0x1000, scoped, tag = 'input window, operand 1']
    #allocation6 [shape = 's32[2]{0}', space=sflag, size = 0x8, scoped, tag = 'scoped memory for tpu_custom_call.1']
    #allocation7 [shape = 'u8[393216]{0}', space=vmem, size = 0x60000, scoped, tag = 'input window, operand 2']
    #allocation8 [shape = 'u8[8192]{0}', space=vmem, size = 0x2000, scoped, tag = 'input window, operand 3']
    #allocation9 [shape = 's32[2]{0}', space=sflag, size = 0x8, scoped, tag = 'scoped memory for tpu_custom_call.1']
    #allocation10 [shape = 'u8[196608]{0}', space=vmem, size = 0x30000, scoped, tag = 'input window, operand 4, single buffered']
    #allocation11 [shape = 'u8[8192]{0}', space=vmem, size = 0x2000, scoped, tag = 'output window, operand 0']
    %11 = vsyncpa [#allocation3], 0
    %s12 = scalar_lea.sflag [#allocation3], 1
    %13 = vsyncpa %s12, 0
    %14 = vsyncpa [#allocation6], 0
    %s15 = scalar_lea.sflag [#allocation6], 1
    %16 = vsyncpa %s15, 0
    %17 = vsyncpa [#allocation9], 0
    %s18 = scalar_lea.sflag [#allocation9], 1
    %19 = vsyncpa %s18, 0
    %20 = vsyncpa [#allocation4], 0
    %s21 = scalar_lea.sflag [#allocation4], 1
    %22 = vsyncpa %s21, 0
    loop: start=0, step=1, limit=6
    $region2: #{tpu_custom_call.1} parent=1 // loop_pre_header
      _
    $region3: #{tpu_custom_call.1} parent=1 // loop_header
      %s24 = sphi 0, %s28
      %p25 = scmp.ge.s32.totalorder %s24, 6
      %s34 = sphi 0, %s36
      %s37 = sphi 0, %s34
      %s38 = sphi 0, %s37
      %s54 = sphi 0, %s38
      %s60 = sphi 0, %s62
      %s63 = sphi 0, %s60
      %s64 = sphi 0, %s63
      %s80 = sphi 0, %s64
      %s86 = sphi 0, %s88
      %s89 = sphi 0, %s86
      %s90 = sphi 0, %s89
      %s106 = sphi 0, %s90
      %s112 = sphi 0, %s114
      %s115 = sphi 0, %s112
      %s116 = sphi 0, %s115
      %s132 = sphi 0, %s116
      %s136 = sphi 0, %s136
      %s138 = sphi 0, %s136
      %s139 = sphi 0, %s138
      %s153 = sphi 0, %s139
      %s157 = sphi 0, %s157
      %s159 = sphi 0, %s157
      %s160 = sphi 0, %s159
      %s174 = sphi 0, %s160
      %s180 = sphi 0, %s182
      %s183 = sphi 0, %s180
      %s184 = sphi 0, %s183
      %s200 = sphi 0, %s184
    $region4: #{tpu_custom_call.1} parent=1 // loop_header_branch
      %27 = sbr.rel (%p25) target = $region8
    $region5: #{tpu_custom_call.1} parent=1 // loop_body
      %s29 = ssub.s32 %s24, 1
      %s30 = ssub.s32 %s24, 2
      %s31 = sadd.s32 %s24, 1
      %s32 = ssub.s32 %s24, %s31
      %p33 = scmp.eq.s32.totalorder %s32, 0
      %s35 = sadd.s32 %s34, 1
      %s36 = scalar_select %p33, %s34, %s35
      %p39 = pneg %p33
      %p40 = scmp.eq.s32.totalorder %s24, 3
      %p41 = por %p39, %p40
      %p42 = scmp.ne.s32.totalorder %s34, %s37
      %p43 = scmp.eq.s32.totalorder %s24, 0
      %p44 = por %p42, %p43
      %p45 = scmp.ne.s32.totalorder %s34, %s37
      %p46 = scmp.eq.s32.totalorder %s29, 3
      %p47 = por %p45, %p46
      %p48 = scmp.ne.s32.totalorder %s37, %s38
      %p49 = scmp.eq.s32.totalorder %s29, 0
      %p50 = por %p48, %p49
      %p51 = scmp.ne.s32.totalorder %s37, %s38
      %p52 = scmp.eq.s32.totalorder %s30, 3
      %p53 = por %p51, %p52
      %p55 = scmp.ne.s32.totalorder %s38, %s54
      %p56 = scmp.eq.s32.totalorder %s30, 0
      %p57 = por %p55, %p56
      %s58 = ssub.s32 %s24, %s31
      %p59 = scmp.eq.s32.totalorder %s58, 0
      %s61 = sadd.s32 %s60, 1
      %s62 = scalar_select %p59, %s60, %s61
      %p65 = pneg %p59
      %p66 = scmp.eq.s32.totalorder %s24, 3
      %p67 = por %p65, %p66
      %p68 = scmp.ne.s32.totalorder %s60, %s63
      %p69 = scmp.eq.s32.totalorder %s24, 0
      %p70 = por %p68, %p69
      %p71 = scmp.ne.s32.totalorder %s60, %s63
      %p72 = scmp.eq.s32.totalorder %s29, 3
      %p73 = por %p71, %p72
      %p74 = scmp.ne.s32.totalorder %s63, %s64
      %p75 = scmp.eq.s32.totalorder %s29, 0
      %p76 = por %p74, %p75
      %p77 = scmp.ne.s32.totalorder %s63, %s64
      %p78 = scmp.eq.s32.totalorder %s30, 3
      %p79 = por %p77, %p78
      %p81 = scmp.ne.s32.totalorder %s64, %s80
      %p82 = scmp.eq.s32.totalorder %s30, 0
      %p83 = por %p81, %p82
      %s84 = ssub.s32 %s24, %s31
      %p85 = scmp.eq.s32.totalorder %s84, 0
      %s87 = sadd.s32 %s86, 1
      %s88 = scalar_select %p85, %s86, %s87
      %p91 = pneg %p85
      %p92 = scmp.eq.s32.totalorder %s24, 3
      %p93 = por %p91, %p92
      %p94 = scmp.ne.s32.totalorder %s86, %s89
      %p95 = scmp.eq.s32.totalorder %s24, 0
      %p96 = por %p94, %p95
      %p97 = scmp.ne.s32.totalorder %s86, %s89
      %p98 = scmp.eq.s32.totalorder %s29, 3
      %p99 = por %p97, %p98
      %p100 = scmp.ne.s32.totalorder %s89, %s90
      %p101 = scmp.eq.s32.totalorder %s29, 0
      %p102 = por %p100, %p101
      %p103 = scmp.ne.s32.totalorder %s89, %s90
      %p104 = scmp.eq.s32.totalorder %s30, 3
      %p105 = por %p103, %p104
      %p107 = scmp.ne.s32.totalorder %s90, %s106
      %p108 = scmp.eq.s32.totalorder %s30, 0
      %p109 = por %p107, %p108
      %s110 = ssub.s32 %s24, %s31
      %p111 = scmp.eq.s32.totalorder %s110, 0
      %s113 = sadd.s32 %s112, 1
      %s114 = scalar_select %p111, %s112, %s113
      %p117 = pneg %p111
      %p118 = scmp.eq.s32.totalorder %s24, 3
      %p119 = por %p117, %p118
      %p120 = scmp.ne.s32.totalorder %s112, %s115
      %p121 = scmp.eq.s32.totalorder %s24, 0
      %p122 = por %p120, %p121
      %p123 = scmp.ne.s32.totalorder %s112, %s115
      %p124 = scmp.eq.s32.totalorder %s29, 3
      %p125 = por %p123, %p124
      %p126 = scmp.ne.s32.totalorder %s115, %s116
      %p127 = scmp.eq.s32.totalorder %s29, 0
      %p128 = por %p126, %p127
      %p129 = scmp.ne.s32.totalorder %s115, %s116
      %p130 = scmp.eq.s32.totalorder %s30, 3
      %p131 = por %p129, %p130
      %p133 = scmp.ne.s32.totalorder %s116, %s132
      %p134 = scmp.eq.s32.totalorder %s30, 0
      %p135 = por %p133, %p134
      %s137 = sadd.s32 %s136, 1
      %p140 = scmp.eq.s32.totalorder %s24, 3
      %p141 = scmp.ne.s32.totalorder %s136, %s138
      %p142 = scmp.eq.s32.totalorder %s24, 0
      %p143 = por %p141, %p142
      %p144 = scmp.ne.s32.totalorder %s136, %s138
      %p145 = scmp.eq.s32.totalorder %s29, 3
      %p146 = por %p144, %p145
      %p147 = scmp.ne.s32.totalorder %s138, %s139
      %p148 = scmp.eq.s32.totalorder %s29, 0
      %p149 = por %p147, %p148
      %p150 = scmp.ne.s32.totalorder %s138, %s139
      %p151 = scmp.eq.s32.totalorder %s30, 3
      %p152 = por %p150, %p151
      %p154 = scmp.ne.s32.totalorder %s139, %s153
      %p155 = scmp.eq.s32.totalorder %s30, 0
      %p156 = por %p154, %p155
      %s158 = sadd.s32 %s157, 1
      %p161 = scmp.eq.s32.totalorder %s24, 3
      %p162 = scmp.ne.s32.totalorder %s157, %s159
      %p163 = scmp.eq.s32.totalorder %s24, 0
      %p164 = por %p162, %p163
      %p165 = scmp.ne.s32.totalorder %s157, %s159
      %p166 = scmp.eq.s32.totalorder %s29, 3
      %p167 = por %p165, %p166
      %p168 = scmp.ne.s32.totalorder %s159, %s160
      %p169 = scmp.eq.s32.totalorder %s29, 0
      %p170 = por %p168, %p169
      %p171 = scmp.ne.s32.totalorder %s159, %s160
      %p172 = scmp.eq.s32.totalorder %s30, 3
      %p173 = por %p171, %p172
      %p175 = scmp.ne.s32.totalorder %s160, %s174
      %p176 = scmp.eq.s32.totalorder %s30, 0
      %p177 = por %p175, %p176
      %s178 = ssub.s32 %s24, %s31
      %p179 = scmp.eq.s32.totalorder %s178, 0
      %s181 = sadd.s32 %s180, 1
      %s182 = scalar_select %p179, %s180, %s181
      %p185 = pneg %p179
      %p186 = scmp.eq.s32.totalorder %s24, 3
      %p187 = por %p185, %p186
      %p188 = scmp.ne.s32.totalorder %s180, %s183
      %p189 = scmp.eq.s32.totalorder %s24, 0
      %p190 = por %p188, %p189
      %p191 = scmp.ne.s32.totalorder %s180, %s183
      %p192 = scmp.eq.s32.totalorder %s29, 3
      %p193 = por %p191, %p192
      %p194 = scmp.ne.s32.totalorder %s183, %s184
      %p195 = scmp.eq.s32.totalorder %s29, 0
      %p196 = por %p194, %p195
      %p197 = scmp.ne.s32.totalorder %s183, %s184
      %p198 = scmp.eq.s32.totalorder %s30, 3
      %p199 = por %p197, %p198
      %p201 = scmp.ne.s32.totalorder %s184, %s200
      %p202 = scmp.eq.s32.totalorder %s30, 0
      %p203 = por %p201, %p202
      %p204 = scmp.le.s32.totalorder 1, %s24
      %p205 = scmp.lt.s32.totalorder %s24, 5
      %p206 = pnand %p204, %p205
      %p207 = pneg %p206
      // Predicated region
      $region9: #{tpu_custom_call.1} parent=5 // pred_check
        _
      $region10: #{tpu_custom_call.1} parent=5 // pred_check_branch
        %209 = sbr.rel (%p206) target = $region12
      $region11: #{tpu_custom_call.1} parent=5 // pred_region
        %s210 = ssub.s32 %s24, 1
        // Predicated region
        $region13: #{tpu_custom_call.1} parent=11 // pred_check
          %p211 = pneg %p149
        $region14: #{tpu_custom_call.1} parent=11 // pred_check_branch
          %213 = sbr.rel (%p211) target = $region16
        $region15: #{tpu_custom_call.1} parent=11 // pred_region
          %s215 = ssub.s32 6144, 6144
          %216 = vsyncadd [#allocation9], %s215
          %s217 = sshll.u32 [#allocation10], 4
          %s218 = int_to_ptr.vmem [resolvable:$true] %s217
          %223 = dma.hbm_to_vmem [thread:$0]  %s4, 6144, %s218, [#allocation9], 64, 64, 4
        $region16: #{tpu_custom_call.1} parent=11 // pred_fallthru
          _
        // Predicated region
        $region17: #{tpu_custom_call.1} parent=11 // pred_check
          %p224 = pneg %p170
        $region18: #{tpu_custom_call.1} parent=11 // pred_check_branch
          %226 = sbr.rel (%p224) target = $region20
        $region19: #{tpu_custom_call.1} parent=11 // pred_region
          _
        $region20: #{tpu_custom_call.1} parent=11 // pred_fallthru
          _
      $region12: #{tpu_custom_call.1} parent=5 // pred_fallthru
        _
      %p227 = scmp.lt.s32.totalorder %s24, 4
      // Predicated region
      $region21: #{tpu_custom_call.1} parent=5 // pred_check
        %p228 = pneg %p227
      $region22: #{tpu_custom_call.1} parent=5 // pred_check_branch
        %230 = sbr.rel (%p228) target = $region24
      $region23: #{tpu_custom_call.1} parent=5 // pred_region
        // Predicated region
        $region25: #{tpu_custom_call.1} parent=23 // pred_check
          %p231 = pneg %p44
        $region26: #{tpu_custom_call.1} parent=23 // pred_check_branch
          %233 = sbr.rel (%p231) target = $region28
        $region27: #{tpu_custom_call.1} parent=23 // pred_region
          %s234 = sand.u32 %s34, 1
          %s235 = scalar_lea.sflag [#allocation3], %s234
          %s236 = sand.u32 %s34, 1
          %s237 = smul.addr %s236, 192
          %s238 = scalar_lea.vmem [#allocation2], %s237
          %s240 = ssub.s32 3072, 3072
          %241 = vsyncadd %s235, %s240
          %s242 = smul.addr %s24, 48
          %s243 = smul.addr %s242, 64
          %s244 = scalar_lea.hbm %s0, %s243
          %s245 = sshll.u32 %s238, 4
          %s246 = int_to_ptr.vmem [resolvable:$true] %s245
          %251 = dma.hbm_to_vmem [thread:$0]  %s244, 3072, %s246, %s235, 384, 384, 24
        $region28: #{tpu_custom_call.1} parent=23 // pred_fallthru
          _
        // Predicated region
        $region29: #{tpu_custom_call.1} parent=23 // pred_check
          %p252 = pneg %p70
        $region30: #{tpu_custom_call.1} parent=23 // pred_check_branch
          %254 = sbr.rel (%p252) target = $region32
        $region31: #{tpu_custom_call.1} parent=23 // pred_region
          %s255 = sand.u32 %s24, 1
          %s256 = scalar_lea.sflag [#allocation6], %s255
          %s257 = sand.u32 %s60, 1
          %s258 = smul.addr %s257, 4
          %s259 = scalar_lea.vmem [#allocation5], %s258
          %s261 = ssub.s32 64, 64
          %262 = vsyncadd %s256, %s261
          %s263 = smul.addr %s24, 64
          %s264 = scalar_lea.hbm %s1, %s263
          %s266 = sshll.u32 %s259, 4
          %s267 = int_to_ptr.vmem [resolvable:$true] %s266
          %269 = dma.hbm_to_vmem [thread:$0]  %s264, 64, %s267, %s256
        $region32: #{tpu_custom_call.1} parent=23 // pred_fallthru
          _
        // Predicated region
        $region33: #{tpu_custom_call.1} parent=23 // pred_check
          %p270 = pneg %p96
        $region34: #{tpu_custom_call.1} parent=23 // pred_check_branch
          %272 = sbr.rel (%p270) target = $region36
        $region35: #{tpu_custom_call.1} parent=23 // pred_region
          %s273 = sand.u32 %s24, 1
          %s274 = scalar_lea.sflag [#allocation6], %s273
          %s275 = sand.u32 %s86, 1
          %s276 = smul.addr %s275, 384
          %s277 = scalar_lea.vmem [#allocation7], %s276
          %s279 = ssub.s32 6144, 6144
          %280 = vsyncadd %s274, %s279
          %s281 = smul.addr %s24, 96
          %s282 = smul.addr %s281, 64
          %s283 = scalar_lea.hbm %s2, %s282
          %s284 = sshll.u32 %s277, 4
          %s285 = int_to_ptr.vmem [resolvable:$true] %s284
          %290 = dma.hbm_to_vmem [thread:$0]  %s283, 6144, %s285, %s274, 384, 384, 24
        $region36: #{tpu_custom_call.1} parent=23 // pred_fallthru
          _
        // Predicated region
        $region37: #{tpu_custom_call.1} parent=23 // pred_check
          %p291 = pneg %p122
        $region38: #{tpu_custom_call.1} parent=23 // pred_check_branch
          %293 = sbr.rel (%p291) target = $region40
        $region39: #{tpu_custom_call.1} parent=23 // pred_region
          %s294 = sand.u32 %s24, 1
          %s295 = scalar_lea.sflag [#allocation9], %s294
          %s296 = sand.u32 %s112, 1
          %s297 = smul.addr %s296, 8
          %s298 = scalar_lea.vmem [#allocation8], %s297
          %s300 = ssub.s32 128, 128
          %301 = vsyncadd %s295, %s300
          %s302 = smul.addr %s24, 128
          %s303 = scalar_lea.hbm %s3, %s302
          %s305 = sshll.u32 %s298, 4
          %s306 = int_to_ptr.vmem [resolvable:$true] %s305
          %308 = dma.hbm_to_vmem [thread:$0]  %s303, 128, %s306, %s295
        $region40: #{tpu_custom_call.1} parent=23 // pred_fallthru
          _
      $region24: #{tpu_custom_call.1} parent=5 // pred_fallthru
        _
      %p309 = scmp.le.s32.totalorder 1, %s24
      %p310 = scmp.lt.s32.totalorder %s24, 5
      %p311 = pnand %p309, %p310
      %p312 = pneg %p311
      // Predicated region
      $region41: #{tpu_custom_call.1} parent=5 // pred_check
        _
      $region42: #{tpu_custom_call.1} parent=5 // pred_check_branch
        %314 = sbr.rel (%p311) target = $region44
      $region43: #{tpu_custom_call.1} parent=5 // pred_region
        %s315 = ssub.s32 %s24, 1
        %s316 = sand.u32 %s37, 1
        %s317 = scalar_lea.sflag [#allocation3], %s316
        %s318 = sand.u32 %s37, 1
        %s319 = smul.addr %s318, 192
        %s320 = scalar_lea.vmem [#allocation2], %s319
        // Predicated region
        $region45: #{tpu_custom_call.1} parent=43 // pred_check
          %p321 = pneg %p50
        $region46: #{tpu_custom_call.1} parent=43 // pred_check_branch
          %323 = sbr.rel (%p321) target = $region48
        $region47: #{tpu_custom_call.1} parent=43 // pred_region
          %324 = dma.done %s317, 3072
        $region48: #{tpu_custom_call.1} parent=43 // pred_fallthru
          _
        %s325 = sand.u32 %s29, 1
        %s326 = scalar_lea.sflag [#allocation6], %s325
        %s327 = sand.u32 %s63, 1
        %s328 = smul.addr %s327, 4
        %s329 = scalar_lea.vmem [#allocation5], %s328
        // Predicated region
        $region49: #{tpu_custom_call.1} parent=43 // pred_check
          %p330 = pneg %p76
        $region50: #{tpu_custom_call.1} parent=43 // pred_check_branch
          %332 = sbr.rel (%p330) target = $region52
        $region51: #{tpu_custom_call.1} parent=43 // pred_region
          %333 = dma.done %s326, 64
        $region52: #{tpu_custom_call.1} parent=43 // pred_fallthru
          _
        %s334 = sand.u32 %s29, 1
        %s335 = scalar_lea.sflag [#allocation6], %s334
        %s336 = sand.u32 %s89, 1
        %s337 = smul.addr %s336, 384
        %s338 = scalar_lea.vmem [#allocation7], %s337
        // Predicated region
        $region53: #{tpu_custom_call.1} parent=43 // pred_check
          %p339 = pneg %p102
        $region54: #{tpu_custom_call.1} parent=43 // pred_check_branch
          %341 = sbr.rel (%p339) target = $region56
        $region55: #{tpu_custom_call.1} parent=43 // pred_region
          %342 = dma.done %s335, 6144
        $region56: #{tpu_custom_call.1} parent=43 // pred_fallthru
          _
        %s343 = sand.u32 %s29, 1
        %s344 = scalar_lea.sflag [#allocation9], %s343
        %s345 = sand.u32 %s115, 1
        %s346 = smul.addr %s345, 8
        %s347 = scalar_lea.vmem [#allocation8], %s346
        // Predicated region
        $region57: #{tpu_custom_call.1} parent=43 // pred_check
          %p348 = pneg %p128
        $region58: #{tpu_custom_call.1} parent=43 // pred_check_branch
          %350 = sbr.rel (%p348) target = $region60
        $region59: #{tpu_custom_call.1} parent=43 // pred_region
          %351 = dma.done %s344, 128
        $region60: #{tpu_custom_call.1} parent=43 // pred_fallthru
          _
        // Predicated region
        $region61: #{tpu_custom_call.1} parent=43 // pred_check
          %p352 = pneg %p149
        $region62: #{tpu_custom_call.1} parent=43 // pred_check_branch
          %354 = sbr.rel (%p352) target = $region64
        $region63: #{tpu_custom_call.1} parent=43 // pred_region
          %355 = dma.done [#allocation9], 6144
        $region64: #{tpu_custom_call.1} parent=43 // pred_fallthru
          _
        %s356 = sand.u32 %s37, 1
        %s357 = scalar_lea.sflag [#allocation3], %s356
        %s358 = sand.u32 %s37, 1
        %s359 = smul.addr %s358, 192
        %s360 = scalar_lea.vmem [#allocation2], %s359
        %p361 = pneg %p50
        %p362 = pneg %p47
        %s363 = sand.u32 %s29, 1
        %s364 = scalar_lea.sflag [#allocation6], %s363
        %s365 = sand.u32 %s63, 1
        %s366 = smul.addr %s365, 4
        %s367 = scalar_lea.vmem [#allocation5], %s366
        %p368 = pneg %p76
        %p369 = pneg %p73
        %s370 = sand.u32 %s29, 1
        %s371 = scalar_lea.sflag [#allocation6], %s370
        %s372 = sand.u32 %s89, 1
        %s373 = smul.addr %s372, 384
        %s374 = scalar_lea.vmem [#allocation7], %s373
        %p375 = pneg %p102
        %p376 = pneg %p99
        %s377 = sand.u32 %s29, 1
        %s378 = scalar_lea.sflag [#allocation9], %s377
        %s379 = sand.u32 %s115, 1
        %s380 = smul.addr %s379, 8
        %s381 = scalar_lea.vmem [#allocation8], %s380
        %p382 = pneg %p128
        %p383 = pneg %p125
        %p384 = pneg %p149
        %p385 = pneg %p146
        %p386 = pneg %p170
        %p387 = pneg %p167
        %p388 = pneg %p196
        %p389 = pneg %p193
        %s390 = sand.u32 %s183, 1
        %s391 = scalar_lea.sflag [#allocation4], %s390
        %s392 = sand.u32 %s183, 1
        %s393 = smul.addr %s392, 8
        %s394 = scalar_lea.vmem [#allocation11], %s393
        %v396 = vld [vmem:[%s320] sm:$0xff]
        %v397 = vld [vmem:[%s320 + $0x8] sm:$0xff]
        %v398 = vld [vmem:[%s320 + $0x10] sm:$0xff]
        %v399 = vld [vmem:[%s320 + $0x18] sm:$0xff]
        %v400 = vld [vmem:[%s320 + $0x20] sm:$0xff]
        %v401 = vld [vmem:[%s320 + $0x28] sm:$0xff]
        %v402 = vld [vmem:[%s320 + $0x30] sm:$0xff]
        %v403 = vld [vmem:[%s320 + $0x38] sm:$0xff]
        %v404 = vld [vmem:[%s320 + $0x40] sm:$0xff]
        %v405 = vld [vmem:[%s320 + $0x48] sm:$0xff]
        %v406 = vld [vmem:[%s320 + $0x50] sm:$0xff]
        %v407 = vld [vmem:[%s320 + $0x58] sm:$0xff]
        %v408 = vld [vmem:[%s320 + $0x60] sm:$0xff]
        %v409 = vld [vmem:[%s320 + $0x68] sm:$0xff]
        %v410 = vld [vmem:[%s320 + $0x70] sm:$0xff]
        %v411 = vld [vmem:[%s320 + $0x78] sm:$0xff]
        %v412 = vld [vmem:[%s320 + $0x80] sm:$0xff]
        %v413 = vld [vmem:[%s320 + $0x88] sm:$0xff]
        %v414 = vld [vmem:[%s320 + $0x90] sm:$0xff]
        %v415 = vld [vmem:[%s320 + $0x98] sm:$0xff]
        %v416 = vld [vmem:[%s320 + $0xa0] sm:$0xff]
        %v417 = vld [vmem:[%s320 + $0xa8] sm:$0xff]
        %v418 = vld [vmem:[%s320 + $0xb0] sm:$0xff]
        %v419 = vld [vmem:[%s320 + $0xb8] sm:$0xff]
        %v420 = vld [vmem:[%s329] sm:$0xf]
        %v421 = vld [vmem:[%s338] sm:$0xff]
        %v422 = vld [vmem:[%s338 + $0x8] sm:$0xff]
        %v423 = vld [vmem:[%s338 + $0x10] sm:$0xff]
        %v424 = vld [vmem:[%s338 + $0x18] sm:$0xff]
        %v425 = vld [vmem:[%s338 + $0x20] sm:$0xff]
        %v426 = vld [vmem:[%s338 + $0x28] sm:$0xff]
        %v427 = vld [vmem:[%s338 + $0x30] sm:$0xff]
        %v428 = vld [vmem:[%s338 + $0x38] sm:$0xff]
        %v429 = vld [vmem:[%s338 + $0x40] sm:$0xff]
        %v430 = vld [vmem:[%s338 + $0x48] sm:$0xff]
        %v431 = vld [vmem:[%s338 + $0x50] sm:$0xff]
        %v432 = vld [vmem:[%s338 + $0x58] sm:$0xff]
        %v433 = vld [vmem:[%s338 + $0x60] sm:$0xff]
        %v434 = vld [vmem:[%s338 + $0x68] sm:$0xff]
        %v435 = vld [vmem:[%s338 + $0x70] sm:$0xff]
        %v436 = vld [vmem:[%s338 + $0x78] sm:$0xff]
        %v437 = vld [vmem:[%s338 + $0x80] sm:$0xff]
        %v438 = vld [vmem:[%s338 + $0x88] sm:$0xff]
        %v439 = vld [vmem:[%s338 + $0x90] sm:$0xff]
        %v440 = vld [vmem:[%s338 + $0x98] sm:$0xff]
        %v441 = vld [vmem:[%s338 + $0xa0] sm:$0xff]
        %v442 = vld [vmem:[%s338 + $0xa8] sm:$0xff]
        %v443 = vld [vmem:[%s338 + $0xb0] sm:$0xff]
        %v444 = vld [vmem:[%s338 + $0xb8] sm:$0xff]
        %v445 = vld [vmem:[%s338 + $0xc0] sm:$0xff]
        %v446 = vld [vmem:[%s338 + $0xc8] sm:$0xff]
        %v447 = vld [vmem:[%s338 + $0xd0] sm:$0xff]
        %v448 = vld [vmem:[%s338 + $0xd8] sm:$0xff]
        %v449 = vld [vmem:[%s338 + $0xe0] sm:$0xff]
        %v450 = vld [vmem:[%s338 + $0xe8] sm:$0xff]
        %v451 = vld [vmem:[%s338 + $0xf0] sm:$0xff]
        %v452 = vld [vmem:[%s338 + $0xf8] sm:$0xff]
        %v453 = vld [vmem:[%s338 + $0x100] sm:$0xff]
        %v454 = vld [vmem:[%s338 + $0x108] sm:$0xff]
        %v455 = vld [vmem:[%s338 + $0x110] sm:$0xff]
        %v456 = vld [vmem:[%s338 + $0x118] sm:$0xff]
        %v457 = vld [vmem:[%s338 + $0x120] sm:$0xff]
        %v458 = vld [vmem:[%s338 + $0x128] sm:$0xff]
        %v459 = vld [vmem:[%s338 + $0x130] sm:$0xff]
        %v460 = vld [vmem:[%s338 + $0x138] sm:$0xff]
        %v461 = vld [vmem:[%s338 + $0x140] sm:$0xff]
        %v462 = vld [vmem:[%s338 + $0x148] sm:$0xff]
        %v463 = vld [vmem:[%s338 + $0x150] sm:$0xff]
        %v464 = vld [vmem:[%s338 + $0x158] sm:$0xff]
        %v465 = vld [vmem:[%s338 + $0x160] sm:$0xff]
        %v466 = vld [vmem:[%s338 + $0x168] sm:$0xff]
        %v467 = vld [vmem:[%s338 + $0x170] sm:$0xff]
        %v468 = vld [vmem:[%s338 + $0x178] sm:$0xff]
        %v469 = vld [vmem:[%s347] sm:$0xff]
        %v470 = vld [vmem:[#allocation10] sm:$0xf]
        %v471 = vld [vmem:[#allocation10 + $0x4] sm:$0xf]
        %v472 = vld [vmem:[#allocation10 + $0x8] sm:$0xf]
        %v473 = vld [vmem:[#allocation10 + $0xc] sm:$0xf]
        %v474 = vld [vmem:[#allocation10 + $0x10] sm:$0xf]
        %v475 = vld [vmem:[#allocation10 + $0x14] sm:$0xf]
        %v476 = vld [vmem:[#allocation10 + $0x18] sm:$0xf]
        %v477 = vld [vmem:[#allocation10 + $0x1c] sm:$0xf]
        %v478 = vld [vmem:[#allocation10 + $0x20] sm:$0xf]
        %v479 = vld [vmem:[#allocation10 + $0x24] sm:$0xf]
        %v480 = vld [vmem:[#allocation10 + $0x28] sm:$0xf]
        %v481 = vld [vmem:[#allocation10 + $0x2c] sm:$0xf]
        %v482 = vld [vmem:[#allocation10 + $0x30] sm:$0xf]
        %v483 = vld [vmem:[#allocation10 + $0x34] sm:$0xf]
        %v484 = vld [vmem:[#allocation10 + $0x38] sm:$0xf]
        %v485 = vld [vmem:[#allocation10 + $0x3c] sm:$0xf]
        %v486 = vld [vmem:[#allocation10 + $0x40] sm:$0xf]
        %v487 = vld [vmem:[#allocation10 + $0x44] sm:$0xf]
        %v488 = vld [vmem:[#allocation10 + $0x48] sm:$0xf]
        %v489 = vld [vmem:[#allocation10 + $0x4c] sm:$0xf]
        %v490 = vld [vmem:[#allocation10 + $0x50] sm:$0xf]
        %v491 = vld [vmem:[#allocation10 + $0x54] sm:$0xf]
        %v492 = vld [vmem:[#allocation10 + $0x58] sm:$0xf]
        %v493 = vld [vmem:[#allocation10 + $0x5c] sm:$0xf]
        %v494 = vld [vmem:[#allocation10 + $0x60] sm:$0xf]
        %v495 = vld [vmem:[#allocation10 + $0x64] sm:$0xf]
        %v496 = vld [vmem:[#allocation10 + $0x68] sm:$0xf]
        %v497 = vld [vmem:[#allocation10 + $0x6c] sm:$0xf]
        %v498 = vld [vmem:[#allocation10 + $0x70] sm:$0xf]
        %v499 = vld [vmem:[#allocation10 + $0x74] sm:$0xf]
        %v500 = vld [vmem:[#allocation10 + $0x78] sm:$0xf]
        %v501 = vld [vmem:[#allocation10 + $0x7c] sm:$0xf]
        %v502 = vld [vmem:[#allocation10 + $0x80] sm:$0xf]
        %v503 = vld [vmem:[#allocation10 + $0x84] sm:$0xf]
        %v504 = vld [vmem:[#allocation10 + $0x88] sm:$0xf]
        %v505 = vld [vmem:[#allocation10 + $0x8c] sm:$0xf]
        %v506 = vld [vmem:[#allocation10 + $0x90] sm:$0xf]
        %v507 = vld [vmem:[#allocation10 + $0x94] sm:$0xf]
        %v508 = vld [vmem:[#allocation10 + $0x98] sm:$0xf]
        %v509 = vld [vmem:[#allocation10 + $0x9c] sm:$0xf]
        %v510 = vld [vmem:[#allocation10 + $0xa0] sm:$0xf]
        %v511 = vld [vmem:[#allocation10 + $0xa4] sm:$0xf]
        %v512 = vld [vmem:[#allocation10 + $0xa8] sm:$0xf]
        %v513 = vld [vmem:[#allocation10 + $0xac] sm:$0xf]
        %v514 = vld [vmem:[#allocation10 + $0xb0] sm:$0xf]
        %v515 = vld [vmem:[#allocation10 + $0xb4] sm:$0xf]
        %v516 = vld [vmem:[#allocation10 + $0xb8] sm:$0xf]
        %v517 = vld [vmem:[#allocation10 + $0xbc] sm:$0xf]
        %v518 = vld [vmem:[#allocation10 + $0xc0] sm:$0xf]
        %v519 = vld [vmem:[#allocation10 + $0xc4] sm:$0xf]
        %v520 = vld [vmem:[#allocation10 + $0xc8] sm:$0xf]
        %v521 = vld [vmem:[#allocation10 + $0xcc] sm:$0xf]
        %v522 = vld [vmem:[#allocation10 + $0xd0] sm:$0xf]
        %v523 = vld [vmem:[#allocation10 + $0xd4] sm:$0xf]
        %v524 = vld [vmem:[#allocation10 + $0xd8] sm:$0xf]
        %v525 = vld [vmem:[#allocation10 + $0xdc] sm:$0xf]
        %v526 = vld [vmem:[#allocation10 + $0xe0] sm:$0xf]
        %v527 = vld [vmem:[#allocation10 + $0xe4] sm:$0xf]
        %v528 = vld [vmem:[#allocation10 + $0xe8] sm:$0xf]
        %v529 = vld [vmem:[#allocation10 + $0xec] sm:$0xf]
        %v530 = vld [vmem:[#allocation10 + $0xf0] sm:$0xf]
        %v531 = vld [vmem:[#allocation10 + $0xf4] sm:$0xf]
        %v532 = vld [vmem:[#allocation10 + $0xf8] sm:$0xf]
        %v533 = vld [vmem:[#allocation10 + $0xfc] sm:$0xf]
        %v534 = vld [vmem:[#allocation10 + $0x100] sm:$0xf]
        %v535 = vld [vmem:[#allocation10 + $0x104] sm:$0xf]
        %v536 = vld [vmem:[#allocation10 + $0x108] sm:$0xf]
        %v537 = vld [vmem:[#allocation10 + $0x10c] sm:$0xf]
        %v538 = vld [vmem:[#allocation10 + $0x110] sm:$0xf]
        %v539 = vld [vmem:[#allocation10 + $0x114] sm:$0xf]
        %v540 = vld [vmem:[#allocation10 + $0x118] sm:$0xf]
        %v541 = vld [vmem:[#allocation10 + $0x11c] sm:$0xf]
        %v542 = vld [vmem:[#allocation10 + $0x120] sm:$0xf]
        %v543 = vld [vmem:[#allocation10 + $0x124] sm:$0xf]
        %v544 = vld [vmem:[#allocation10 + $0x128] sm:$0xf]
        %v545 = vld [vmem:[#allocation10 + $0x12c] sm:$0xf]
        %v546 = vld [vmem:[#allocation10 + $0x130] sm:$0xf]
        %v547 = vld [vmem:[#allocation10 + $0x134] sm:$0xf]
        %v548 = vld [vmem:[#allocation10 + $0x138] sm:$0xf]
        %v549 = vld [vmem:[#allocation10 + $0x13c] sm:$0xf]
        %v550 = vld [vmem:[#allocation10 + $0x140] sm:$0xf]
        %v551 = vld [vmem:[#allocation10 + $0x144] sm:$0xf]
        %v552 = vld [vmem:[#allocation10 + $0x148] sm:$0xf]
        %v553 = vld [vmem:[#allocation10 + $0x14c] sm:$0xf]
        %v554 = vld [vmem:[#allocation10 + $0x150] sm:$0xf]
        %v555 = vld [vmem:[#allocation10 + $0x154] sm:$0xf]
        %v556 = vld [vmem:[#allocation10 + $0x158] sm:$0xf]
        %v557 = vld [vmem:[#allocation10 + $0x15c] sm:$0xf]
        %v558 = vld [vmem:[#allocation10 + $0x160] sm:$0xf]
        %v559 = vld [vmem:[#allocation10 + $0x164] sm:$0xf]
        %v560 = vld [vmem:[#allocation10 + $0x168] sm:$0xf]
        %v561 = vld [vmem:[#allocation10 + $0x16c] sm:$0xf]
        %v562 = vld [vmem:[#allocation10 + $0x170] sm:$0xf]
        %v563 = vld [vmem:[#allocation10 + $0x174] sm:$0xf]
        %v564 = vld [vmem:[#allocation10 + $0x178] sm:$0xf]
        %v565 = vld [vmem:[#allocation10 + $0x17c] sm:$0xf]
        %v566 = vld [vmem:[%s5] sm:$0x1]
        %v591 = vunpack.c.l.b16 %v396
        %v592 = vunpack.c.h.b16 %v396
        %v593 = vunpack.c.l.b16 %v397
        %v594 = vunpack.c.h.b16 %v397
        %v595 = vunpack.c.l.b16 %v398
        %v596 = vunpack.c.h.b16 %v398
        %v597 = vunpack.c.l.b16 %v399
        %v598 = vunpack.c.h.b16 %v399
        %v599 = vunpack.c.l.b16 %v400
        %v600 = vunpack.c.h.b16 %v400
        %v601 = vunpack.c.l.b16 %v401
        %v602 = vunpack.c.h.b16 %v401
        %v603 = vunpack.c.l.b16 %v402
        %v604 = vunpack.c.h.b16 %v402
        %v605 = vunpack.c.l.b16 %v403
        %v606 = vunpack.c.h.b16 %v403
        %v607 = vunpack.c.l.b16 %v404
        %v608 = vunpack.c.h.b16 %v404
        %v609 = vunpack.c.l.b16 %v405
        %v610 = vunpack.c.h.b16 %v405
        %v611 = vunpack.c.l.b16 %v406
        %v612 = vunpack.c.h.b16 %v406
        %v613 = vunpack.c.l.b16 %v407
        %v614 = vunpack.c.h.b16 %v407
        %v615 = vunpack.c.l.b16 %v408
        %v616 = vunpack.c.h.b16 %v408
        %v617 = vunpack.c.l.b16 %v409
        %v618 = vunpack.c.h.b16 %v409
        %v619 = vunpack.c.l.b16 %v410
        %v620 = vunpack.c.h.b16 %v410
        %v621 = vunpack.c.l.b16 %v411
        %v622 = vunpack.c.h.b16 %v411
        %v623 = vunpack.c.l.b16 %v412
        %v624 = vunpack.c.h.b16 %v412
        %v625 = vunpack.c.l.b16 %v413
        %v626 = vunpack.c.h.b16 %v413
        %v627 = vunpack.c.l.b16 %v414
        %v628 = vunpack.c.h.b16 %v414
        %v629 = vunpack.c.l.b16 %v415
        %v630 = vunpack.c.h.b16 %v415
        %v631 = vunpack.c.l.b16 %v416
        %v632 = vunpack.c.h.b16 %v416
        %v633 = vunpack.c.l.b16 %v417
        %v634 = vunpack.c.h.b16 %v417
        %v635 = vunpack.c.l.b16 %v418
        %v636 = vunpack.c.h.b16 %v418
        %v637 = vunpack.c.l.b16 %v419
        %v638 = vunpack.c.h.b16 %v419
        %v639 = vpack.c.b16 %v597, %v591
        %v640 = vpack.c.b16 %v598, %v592
        %v641 = vpack.c.b16 %v599, %v593
        %v642 = vpack.c.b16 %v600, %v594
        %v643 = vpack.c.b16 %v601, %v595
        %v644 = vpack.c.b16 %v602, %v596
        %v645 = vpack.c.b16 %v609, %v603
        %v646 = vpack.c.b16 %v610, %v604
        %v647 = vpack.c.b16 %v611, %v605
        %v648 = vpack.c.b16 %v612, %v606
        %v649 = vpack.c.b16 %v613, %v607
        %v650 = vpack.c.b16 %v614, %v608
        %v651 = vpack.c.b16 %v621, %v615
        %v652 = vpack.c.b16 %v622, %v616
        %v653 = vpack.c.b16 %v623, %v617
        %v654 = vpack.c.b16 %v624, %v618
        %v655 = vpack.c.b16 %v625, %v619
        %v656 = vpack.c.b16 %v626, %v620
        %v657 = vpack.c.b16 %v633, %v627
        %v658 = vpack.c.b16 %v634, %v628
        %v659 = vpack.c.b16 %v635, %v629
        %v660 = vpack.c.b16 %v636, %v630
        %v661 = vpack.c.b16 %v637, %v631
        %v662 = vpack.c.b16 %v638, %v632
        %vm687 = vcmask 523264
        %v689 = vsel %vm687, %v420, 0
        %691 = vmatprep.subr.bf16.mxu0 0
        %692 = vmatpush1.bf16.msra.mxu0 0
        %693 = vmatprep.subr.bf16.mxu0 0
        %694 = vmatpush1.bf16.msra.mxu0 0
        %695 = vmatprep.subr.bf16.mxu0 0
        %696 = vmatpush1.bf16.msra.mxu0 0
        %697 = vmatprep.subr.bf16.mxu0 0
        %698 = vmatpush1.bf16.msra.mxu0 0
        %699 = vmatprep.subr.bf16.mxu0 %v658
        %700 = vmatpush1.bf16.msra.mxu0 %v657
        %701 = vmatprep.subr.bf16.mxu0 %v652
        %702 = vmatpush1.bf16.msra.mxu0 %v651
        %703 = vmatprep.subr.bf16.mxu0 %v646
        %704 = vmatpush1.bf16.msra.mxu0 %v645
        %705 = vmatprep.subr.bf16.mxu0 %v640
        %706 = vmatpush1.bf16.msra.mxu0 %v639
        %707 = vmatprep.subr.bf16.mxu0 0
        %708 = vmatpush2.bf16.msra.mxu0 0
        %709 = vmatprep.subr.bf16.mxu0 0
        %710 = vmatpush2.bf16.msra.mxu0 0
        %711 = vmatprep.subr.bf16.mxu0 0
        %712 = vmatpush2.bf16.msra.mxu0 0
        %713 = vmatprep.subr.bf16.mxu0 0
        %714 = vmatpush2.bf16.msra.mxu0 0
        %715 = vmatprep.subr.bf16.mxu0 0
        %716 = vmatpush2.bf16.msra.mxu0 0
        %717 = vmatprep.subr.bf16.mxu0 0
        %718 = vmatpush2.bf16.msra.mxu0 0
        %719 = vmatprep.subr.bf16.mxu0 0
        %720 = vmatpush2.bf16.msra.mxu0 0
        %721 = vmatprep.subr.bf16.mxu0 0
        %722 = vmatpush2.bf16.msra.mxu0 0
        %723 = vmatprep.mubr.bf16.mxu0 0
        %724 = vmatmul.mubr.bf16.gmra.mxu0 %v689
        %v725 = vpop.f32.mrf.mxu0
        %v726 = vadd.f32 0.0, %v725
        %v727 = vpop.f32.mrf.mxu0
        %v728 = vadd.f32 0.0, %v727
        %v729 = vpop.f32.mrf.mxu0
        %v730 = vpop.f32.mrf.mxu0
        %731 = vdwg.mxu0
        %732 = vmatprep.subr.bf16.mxu0 0
        %733 = vmatpush1.bf16.msra.mxu0 0
        %734 = vmatprep.subr.bf16.mxu0 0
        %735 = vmatpush1.bf16.msra.mxu0 0
        %736 = vmatprep.subr.bf16.mxu0 0
        %737 = vmatpush1.bf16.msra.mxu0 0
        %738 = vmatprep.subr.bf16.mxu0 0
        %739 = vmatpush1.bf16.msra.mxu0 0
        %740 = vmatprep.subr.bf16.mxu0 %v660
        %741 = vmatpush1.bf16.msra.mxu0 %v659
        %742 = vmatprep.subr.bf16.mxu0 %v654
        %743 = vmatpush1.bf16.msra.mxu0 %v653
        %744 = vmatprep.subr.bf16.mxu0 %v648
        %745 = vmatpush1.bf16.msra.mxu0 %v647
        %746 = vmatprep.subr.bf16.mxu0 %v642
        %747 = vmatpush1.bf16.msra.mxu0 %v641
        %748 = vmatprep.subr.bf16.mxu0 0
        %749 = vmatpush2.bf16.msra.mxu0 0
        %750 = vmatprep.subr.bf16.mxu0 0
        %751 = vmatpush2.bf16.msra.mxu0 0
        %752 = vmatprep.subr.bf16.mxu0 0
        %753 = vmatpush2.bf16.msra.mxu0 0
        %754 = vmatprep.subr.bf16.mxu0 0
        %755 = vmatpush2.bf16.msra.mxu0 0
        %756 = vmatprep.subr.bf16.mxu0 0
        %757 = vmatpush2.bf16.msra.mxu0 0
        %758 = vmatprep.subr.bf16.mxu0 0
        %759 = vmatpush2.bf16.msra.mxu0 0
        %760 = vmatprep.subr.bf16.mxu0 0
        %761 = vmatpush2.bf16.msra.mxu0 0
        %762 = vmatprep.subr.bf16.mxu0 0
        %763 = vmatpush2.bf16.msra.mxu0 0
        %764 = vmatprep.mubr.bf16.mxu0 0
        %765 = vmatmul.mubr.bf16.gmra.mxu0 %v689
        %v766 = vpop.f32.mrf.mxu0
        %v767 = vadd.f32 0.0, %v766
        %v768 = vpop.f32.mrf.mxu0
        %v769 = vadd.f32 0.0, %v768
        %v770 = vpop.f32.mrf.mxu0
        %v771 = vpop.f32.mrf.mxu0
        %772 = vdwg.mxu0
        %773 = vmatprep.subr.bf16.mxu0 0
        %774 = vmatpush1.bf16.msra.mxu0 0
        %775 = vmatprep.subr.bf16.mxu0 0
        %776 = vmatpush1.bf16.msra.mxu0 0
        %777 = vmatprep.subr.bf16.mxu0 0
        %778 = vmatpush1.bf16.msra.mxu0 0
        %779 = vmatprep.subr.bf16.mxu0 0
        %780 = vmatpush1.bf16.msra.mxu0 0
        %781 = vmatprep.subr.bf16.mxu0 %v662
        %782 = vmatpush1.bf16.msra.mxu0 %v661
        %783 = vmatprep.subr.bf16.mxu0 %v656
        %784 = vmatpush1.bf16.msra.mxu0 %v655
        %785 = vmatprep.subr.bf16.mxu0 %v650
        %786 = vmatpush1.bf16.msra.mxu0 %v649
        %787 = vmatprep.subr.bf16.mxu0 %v644
        %788 = vmatpush1.bf16.msra.mxu0 %v643
        %789 = vmatprep.subr.bf16.mxu0 0
        %790 = vmatpush2.bf16.msra.mxu0 0
        %791 = vmatprep.subr.bf16.mxu0 0
        %792 = vmatpush2.bf16.msra.mxu0 0
        %793 = vmatprep.subr.bf16.mxu0 0
        %794 = vmatpush2.bf16.msra.mxu0 0
        %795 = vmatprep.subr.bf16.mxu0 0
        %796 = vmatpush2.bf16.msra.mxu0 0
        %797 = vmatprep.subr.bf16.mxu0 0
        %798 = vmatpush2.bf16.msra.mxu0 0
        %799 = vmatprep.subr.bf16.mxu0 0
        %800 = vmatpush2.bf16.msra.mxu0 0
        %801 = vmatprep.subr.bf16.mxu0 0
        %802 = vmatpush2.bf16.msra.mxu0 0
        %803 = vmatprep.subr.bf16.mxu0 0
        %804 = vmatpush2.bf16.msra.mxu0 0
        %805 = vmatprep.mubr.bf16.mxu0 0
        %806 = vmatmul.mubr.bf16.gmra.mxu0 %v689
        %v807 = vpop.f32.mrf.mxu0
        %v808 = vadd.f32 0.0, %v807
        %v809 = vpop.f32.mrf.mxu0
        %v810 = vadd.f32 0.0, %v809
        %v811 = vpop.f32.mrf.mxu0
        %v812 = vpop.f32.mrf.mxu0
        %813 = vdwg.mxu0
        %v814 = vpack.c.bf16 %v726, %v726
        %v815 = vpack.c.bf16 %v728, %v728
        %v816 = vpack.c.bf16 %v767, %v767
        %v817 = vpack.c.bf16 %v769, %v769
        %v818 = vpack.c.bf16 %v808, %v808
        %v819 = vpack.c.bf16 %v810, %v810
        %v821 = vlaneseq
        %v822 = vshrl.u32 %v821, 7
        %v823 = vsub.s32 0, %v822
        %v824 = vrot.slane %v566, %v823
        %v922 = vunpack.c.l.b16 %v470
        %v923 = vunpack.c.l.b16 %v471
        %v924 = vunpack.c.l.b16 %v472
        %v925 = vunpack.c.l.b16 %v473
        %v926 = vunpack.c.l.b16 %v474
        %v927 = vunpack.c.l.b16 %v475
        %v928 = vunpack.c.l.b16 %v476
        %v929 = vunpack.c.l.b16 %v477
        %v930 = vunpack.c.l.b16 %v478
        %v931 = vunpack.c.l.b16 %v479
        %v932 = vunpack.c.l.b16 %v480
        %v933 = vunpack.c.l.b16 %v481
        %v934 = vunpack.c.l.b16 %v482
        %v935 = vunpack.c.l.b16 %v483
        %v936 = vunpack.c.l.b16 %v484
        %v937 = vunpack.c.l.b16 %v485
        %v938 = vunpack.c.l.b16 %v486
        %v939 = vunpack.c.l.b16 %v487
        %v940 = vunpack.c.l.b16 %v488
        %v941 = vunpack.c.l.b16 %v489
        %v942 = vunpack.c.l.b16 %v490
        %v943 = vunpack.c.l.b16 %v491
        %v944 = vunpack.c.l.b16 %v492
        %v945 = vunpack.c.l.b16 %v493
        %v946 = vunpack.c.l.b16 %v494
        %v947 = vunpack.c.l.b16 %v495
        %v948 = vunpack.c.l.b16 %v496
        %v949 = vunpack.c.l.b16 %v497
        %v950 = vunpack.c.l.b16 %v498
        %v951 = vunpack.c.l.b16 %v499
        %v952 = vunpack.c.l.b16 %v500
        %v953 = vunpack.c.l.b16 %v501
        %v954 = vunpack.c.l.b16 %v502
        %v955 = vunpack.c.l.b16 %v503
        %v956 = vunpack.c.l.b16 %v504
        %v957 = vunpack.c.l.b16 %v505
        %v958 = vunpack.c.l.b16 %v506
        %v959 = vunpack.c.l.b16 %v507
        %v960 = vunpack.c.l.b16 %v508
        %v961 = vunpack.c.l.b16 %v509
        %v962 = vunpack.c.l.b16 %v510
        %v963 = vunpack.c.l.b16 %v511
        %v964 = vunpack.c.l.b16 %v512
        %v965 = vunpack.c.l.b16 %v513
        %v966 = vunpack.c.l.b16 %v514
        %v967 = vunpack.c.l.b16 %v515
        %v968 = vunpack.c.l.b16 %v516
        %v969 = vunpack.c.l.b16 %v517
        %v970 = vunpack.c.l.b16 %v518
        %v971 = vunpack.c.l.b16 %v519
        %v972 = vunpack.c.l.b16 %v520
        %v973 = vunpack.c.l.b16 %v521
        %v974 = vunpack.c.l.b16 %v522
        %v975 = vunpack.c.l.b16 %v523
        %v976 = vunpack.c.l.b16 %v524
        %v977 = vunpack.c.l.b16 %v525
        %v978 = vunpack.c.l.b16 %v526
        %v979 = vunpack.c.l.b16 %v527
        %v980 = vunpack.c.l.b16 %v528
        %v981 = vunpack.c.l.b16 %v529
        %v982 = vunpack.c.l.b16 %v530
        %v983 = vunpack.c.l.b16 %v531
        %v984 = vunpack.c.l.b16 %v532
        %v985 = vunpack.c.l.b16 %v533
        %v986 = vunpack.c.l.b16 %v534
        %v987 = vunpack.c.l.b16 %v535
        %v988 = vunpack.c.l.b16 %v536
        %v989 = vunpack.c.l.b16 %v537
        %v990 = vunpack.c.l.b16 %v538
        %v991 = vunpack.c.l.b16 %v539
        %v992 = vunpack.c.l.b16 %v540
        %v993 = vunpack.c.l.b16 %v541
        %v994 = vunpack.c.l.b16 %v542
        %v995 = vunpack.c.l.b16 %v543
        %v996 = vunpack.c.l.b16 %v544
        %v997 = vunpack.c.l.b16 %v545
        %v998 = vunpack.c.l.b16 %v546
        %v999 = vunpack.c.l.b16 %v547
        %v1000 = vunpack.c.l.b16 %v548
        %v1001 = vunpack.c.l.b16 %v549
        %v1002 = vunpack.c.l.b16 %v550
        %v1003 = vunpack.c.l.b16 %v551
        %v1004 = vunpack.c.l.b16 %v552
        %v1005 = vunpack.c.l.b16 %v553
        %v1006 = vunpack.c.l.b16 %v554
        %v1007 = vunpack.c.l.b16 %v555
        %v1008 = vunpack.c.l.b16 %v556
        %v1009 = vunpack.c.l.b16 %v557
        %v1010 = vunpack.c.l.b16 %v558
        %v1011 = vunpack.c.l.b16 %v559
        %v1012 = vunpack.c.l.b16 %v560
        %v1013 = vunpack.c.l.b16 %v561
        %v1014 = vunpack.c.l.b16 %v562
        %v1015 = vunpack.c.l.b16 %v563
        %v1016 = vunpack.c.l.b16 %v564
        %v1017 = vunpack.c.l.b16 %v565
        %v1018 = vpack.c.b16 %v923, %v922
        %v1019 = vpack.c.b16 %v925, %v924
        %v1020 = vpack.c.b16 %v927, %v926
        %v1021 = vpack.c.b16 %v929, %v928
        %v1022 = vpack.c.b16 %v931, %v930
        %v1023 = vpack.c.b16 %v933, %v932
        %v1024 = vpack.c.b16 %v935, %v934
        %v1025 = vpack.c.b16 %v937, %v936
        %v1026 = vpack.c.b16 %v939, %v938
        %v1027 = vpack.c.b16 %v941, %v940
        %v1028 = vpack.c.b16 %v943, %v942
        %v1029 = vpack.c.b16 %v945, %v944
        %v1030 = vpack.c.b16 %v947, %v946
        %v1031 = vpack.c.b16 %v949, %v948
        %v1032 = vpack.c.b16 %v951, %v950
        %v1033 = vpack.c.b16 %v953, %v952
        %v1034 = vpack.c.b16 %v955, %v954
        %v1035 = vpack.c.b16 %v957, %v956
        %v1036 = vpack.c.b16 %v959, %v958
        %v1037 = vpack.c.b16 %v961, %v960
        %v1038 = vpack.c.b16 %v963, %v962
        %v1039 = vpack.c.b16 %v965, %v964
        %v1040 = vpack.c.b16 %v967, %v966
        %v1041 = vpack.c.b16 %v969, %v968
        %v1042 = vpack.c.b16 %v971, %v970
        %v1043 = vpack.c.b16 %v973, %v972
        %v1044 = vpack.c.b16 %v975, %v974
        %v1045 = vpack.c.b16 %v977, %v976
        %v1046 = vpack.c.b16 %v979, %v978
        %v1047 = vpack.c.b16 %v981, %v980
        %v1048 = vpack.c.b16 %v983, %v982
        %v1049 = vpack.c.b16 %v985, %v984
        %v1050 = vpack.c.b16 %v987, %v986
        %v1051 = vpack.c.b16 %v989, %v988
        %v1052 = vpack.c.b16 %v991, %v990
        %v1053 = vpack.c.b16 %v993, %v992
        %v1054 = vpack.c.b16 %v995, %v994
        %v1055 = vpack.c.b16 %v997, %v996
        %v1056 = vpack.c.b16 %v999, %v998
        %v1057 = vpack.c.b16 %v1001, %v1000
        %v1058 = vpack.c.b16 %v1003, %v1002
        %v1059 = vpack.c.b16 %v1005, %v1004
        %v1060 = vpack.c.b16 %v1007, %v1006
        %v1061 = vpack.c.b16 %v1009, %v1008
        %v1062 = vpack.c.b16 %v1011, %v1010
        %v1063 = vpack.c.b16 %v1013, %v1012
        %v1064 = vpack.c.b16 %v1015, %v1014
        %v1065 = vpack.c.b16 %v1017, %v1016
        %1114 = vmatprep.subr.bf16.mxu0 0
        %1115 = vmatpush1.bf16.msra.mxu0 %v1025
        %1116 = vmatprep.subr.bf16.mxu0 0
        %1117 = vmatpush1.bf16.msra.mxu0 %v1024
        %1118 = vmatprep.subr.bf16.mxu0 0
        %1119 = vmatpush1.bf16.msra.mxu0 %v1023
        %1120 = vmatprep.subr.bf16.mxu0 0
        %1121 = vmatpush1.bf16.msra.mxu0 %v1022
        %1122 = vmatprep.subr.bf16.mxu0 0
        %1123 = vmatpush1.bf16.msra.mxu0 %v1021
        %1124 = vmatprep.subr.bf16.mxu0 0
        %1125 = vmatpush1.bf16.msra.mxu0 %v1020
        %1126 = vmatprep.subr.bf16.mxu0 0
        %1127 = vmatpush1.bf16.msra.mxu0 %v1019
        %1128 = vmatprep.subr.bf16.mxu0 0
        %1129 = vmatpush1.bf16.msra.mxu0 %v1018
        %1130 = vmatprep.subr.bf16.mxu0 0
        %1131 = vmatpush2.bf16.msra.mxu0 %v1033
        %1132 = vmatprep.subr.bf16.mxu0 0
        %1133 = vmatpush2.bf16.msra.mxu0 %v1032
        %1134 = vmatprep.subr.bf16.mxu0 0
        %1135 = vmatpush2.bf16.msra.mxu0 %v1031
        %1136 = vmatprep.subr.bf16.mxu0 0
        %1137 = vmatpush2.bf16.msra.mxu0 %v1030
        %1138 = vmatprep.subr.bf16.mxu0 0
        %1139 = vmatpush2.bf16.msra.mxu0 %v1029
        %1140 = vmatprep.subr.bf16.mxu0 0
        %1141 = vmatpush2.bf16.msra.mxu0 %v1028
        %1142 = vmatprep.subr.bf16.mxu0 0
        %1143 = vmatpush2.bf16.msra.mxu0 %v1027
        %1144 = vmatprep.subr.bf16.mxu0 0
        %1145 = vmatpush2.bf16.msra.mxu0 %v1026
        %1146 = vmatprep.mubr.bf16.mxu0 %v815
        %1147 = vmatmul.mubr.bf16.gmra.mxu0 %v814
        %v1148 = vpop.f32.mrf.mxu0
        %v1149 = vadd.f32 %v824, %v1148
        %v1150 = vpop.f32.mrf.mxu0
        %v1151 = vpop.f32.mrf.mxu0
        %v1152 = vpop.f32.mrf.mxu0
        %1153 = vdwg.mxu0
        %1154 = vmatprep.subr.bf16.mxu0 0
        %1155 = vmatpush1.bf16.msra.mxu0 %v1041
        %1156 = vmatprep.subr.bf16.mxu0 0
        %1157 = vmatpush1.bf16.msra.mxu0 %v1040
        %1158 = vmatprep.subr.bf16.mxu0 0
        %1159 = vmatpush1.bf16.msra.mxu0 %v1039
        %1160 = vmatprep.subr.bf16.mxu0 0
        %1161 = vmatpush1.bf16.msra.mxu0 %v1038
        %1162 = vmatprep.subr.bf16.mxu0 0
        %1163 = vmatpush1.bf16.msra.mxu0 %v1037
        %1164 = vmatprep.subr.bf16.mxu0 0
        %1165 = vmatpush1.bf16.msra.mxu0 %v1036
        %1166 = vmatprep.subr.bf16.mxu0 0
        %1167 = vmatpush1.bf16.msra.mxu0 %v1035
        %1168 = vmatprep.subr.bf16.mxu0 0
        %1169 = vmatpush1.bf16.msra.mxu0 %v1034
        %1170 = vmatprep.subr.bf16.mxu0 0
        %1171 = vmatpush2.bf16.msra.mxu0 %v1049
        %1172 = vmatprep.subr.bf16.mxu0 0
        %1173 = vmatpush2.bf16.msra.mxu0 %v1048
        %1174 = vmatprep.subr.bf16.mxu0 0
        %1175 = vmatpush2.bf16.msra.mxu0 %v1047
        %1176 = vmatprep.subr.bf16.mxu0 0
        %1177 = vmatpush2.bf16.msra.mxu0 %v1046
        %1178 = vmatprep.subr.bf16.mxu0 0
        %1179 = vmatpush2.bf16.msra.mxu0 %v1045
        %1180 = vmatprep.subr.bf16.mxu0 0
        %1181 = vmatpush2.bf16.msra.mxu0 %v1044
        %1182 = vmatprep.subr.bf16.mxu0 0
        %1183 = vmatpush2.bf16.msra.mxu0 %v1043
        %1184 = vmatprep.subr.bf16.mxu0 0
        %1185 = vmatpush2.bf16.msra.mxu0 %v1042
        %1186 = vmatprep.mubr.bf16.mxu0 %v817
        %1187 = vmatmul.mubr.bf16.gmra.mxu0 %v816
        %v1188 = vpop.f32.mrf.mxu0
        %v1189 = vadd.f32 %v1149, %v1188
        %v1190 = vpop.f32.mrf.mxu0
        %v1191 = vpop.f32.mrf.mxu0
        %v1192 = vpop.f32.mrf.mxu0
        %1193 = vdwg.mxu0
        %1194 = vmatprep.subr.bf16.mxu0 0
        %1195 = vmatpush1.bf16.msra.mxu0 %v1057
        %1196 = vmatprep.subr.bf16.mxu0 0
        %1197 = vmatpush1.bf16.msra.mxu0 %v1056
        %1198 = vmatprep.subr.bf16.mxu0 0
        %1199 = vmatpush1.bf16.msra.mxu0 %v1055
        %1200 = vmatprep.subr.bf16.mxu0 0
        %1201 = vmatpush1.bf16.msra.mxu0 %v1054
        %1202 = vmatprep.subr.bf16.mxu0 0
        %1203 = vmatpush1.bf16.msra.mxu0 %v1053
        %1204 = vmatprep.subr.bf16.mxu0 0
        %1205 = vmatpush1.bf16.msra.mxu0 %v1052
        %1206 = vmatprep.subr.bf16.mxu0 0
        %1207 = vmatpush1.bf16.msra.mxu0 %v1051
        %1208 = vmatprep.subr.bf16.mxu0 0
        %1209 = vmatpush1.bf16.msra.mxu0 %v1050
        %1210 = vmatprep.subr.bf16.mxu0 0
        %1211 = vmatpush2.bf16.msra.mxu0 %v1065
        %1212 = vmatprep.subr.bf16.mxu0 0
        %1213 = vmatpush2.bf16.msra.mxu0 %v1064
        %1214 = vmatprep.subr.bf16.mxu0 0
        %1215 = vmatpush2.bf16.msra.mxu0 %v1063
        %1216 = vmatprep.subr.bf16.mxu0 0
        %1217 = vmatpush2.bf16.msra.mxu0 %v1062
        %1218 = vmatprep.subr.bf16.mxu0 0
        %1219 = vmatpush2.bf16.msra.mxu0 %v1061
        %1220 = vmatprep.subr.bf16.mxu0 0
        %1221 = vmatpush2.bf16.msra.mxu0 %v1060
        %1222 = vmatprep.subr.bf16.mxu0 0
        %1223 = vmatpush2.bf16.msra.mxu0 %v1059
        %1224 = vmatprep.subr.bf16.mxu0 0
        %1225 = vmatpush2.bf16.msra.mxu0 %v1058
        %1226 = vmatprep.mubr.bf16.mxu0 %v819
        %1227 = vmatmul.mubr.bf16.gmra.mxu0 %v818
        %v1228 = vpop.f32.mrf.mxu0
        %v1229 = vadd.f32 %v1189, %v1228
        %v1230 = vpop.f32.mrf.mxu0
        %v1231 = vpop.f32.mrf.mxu0
        %v1232 = vpop.f32.mrf.mxu0
        %1233 = vdwg.mxu0
        %v1282 = vunpack.c.l.b16 %v421
        %v1283 = vunpack.c.h.b16 %v421
        %v1284 = vunpack.c.l.b16 %v422
        %v1285 = vunpack.c.h.b16 %v422
        %v1286 = vunpack.c.l.b16 %v423
        %v1287 = vunpack.c.h.b16 %v423
        %v1288 = vunpack.c.l.b16 %v424
        %v1289 = vunpack.c.h.b16 %v424
        %v1290 = vunpack.c.l.b16 %v425
        %v1291 = vunpack.c.h.b16 %v425
        %v1292 = vunpack.c.l.b16 %v426
        %v1293 = vunpack.c.h.b16 %v426
        %v1294 = vunpack.c.l.b16 %v427
        %v1295 = vunpack.c.h.b16 %v427
        %v1296 = vunpack.c.l.b16 %v428
        %v1297 = vunpack.c.h.b16 %v428
        %v1298 = vunpack.c.l.b16 %v429
        %v1299 = vunpack.c.h.b16 %v429
        %v1300 = vunpack.c.l.b16 %v430
        %v1301 = vunpack.c.h.b16 %v430
        %v1302 = vunpack.c.l.b16 %v431
        %v1303 = vunpack.c.h.b16 %v431
        %v1304 = vunpack.c.l.b16 %v432
        %v1305 = vunpack.c.h.b16 %v432
        %v1306 = vunpack.c.l.b16 %v433
        %v1307 = vunpack.c.h.b16 %v433
        %v1308 = vunpack.c.l.b16 %v434
        %v1309 = vunpack.c.h.b16 %v434
        %v1310 = vunpack.c.l.b16 %v435
        %v1311 = vunpack.c.h.b16 %v435
        %v1312 = vunpack.c.l.b16 %v436
        %v1313 = vunpack.c.h.b16 %v436
        %v1314 = vunpack.c.l.b16 %v437
        %v1315 = vunpack.c.h.b16 %v437
        %v1316 = vunpack.c.l.b16 %v438
        %v1317 = vunpack.c.h.b16 %v438
        %v1318 = vunpack.c.l.b16 %v439
        %v1319 = vunpack.c.h.b16 %v439
        %v1320 = vunpack.c.l.b16 %v440
        %v1321 = vunpack.c.h.b16 %v440
        %v1322 = vunpack.c.l.b16 %v441
        %v1323 = vunpack.c.h.b16 %v441
        %v1324 = vunpack.c.l.b16 %v442
        %v1325 = vunpack.c.h.b16 %v442
        %v1326 = vunpack.c.l.b16 %v443
        %v1327 = vunpack.c.h.b16 %v443
        %v1328 = vunpack.c.l.b16 %v444
        %v1329 = vunpack.c.h.b16 %v444
        %v1330 = vunpack.c.l.b16 %v445
        %v1331 = vunpack.c.h.b16 %v445
        %v1332 = vunpack.c.l.b16 %v446
        %v1333 = vunpack.c.h.b16 %v446
        %v1334 = vunpack.c.l.b16 %v447
        %v1335 = vunpack.c.h.b16 %v447
        %v1336 = vunpack.c.l.b16 %v448
        %v1337 = vunpack.c.h.b16 %v448
        %v1338 = vunpack.c.l.b16 %v449
        %v1339 = vunpack.c.h.b16 %v449
        %v1340 = vunpack.c.l.b16 %v450
        %v1341 = vunpack.c.h.b16 %v450
        %v1342 = vunpack.c.l.b16 %v451
        %v1343 = vunpack.c.h.b16 %v451
        %v1344 = vunpack.c.l.b16 %v452
        %v1345 = vunpack.c.h.b16 %v452
        %v1346 = vunpack.c.l.b16 %v453
        %v1347 = vunpack.c.h.b16 %v453
        %v1348 = vunpack.c.l.b16 %v454
        %v1349 = vunpack.c.h.b16 %v454
        %v1350 = vunpack.c.l.b16 %v455
        %v1351 = vunpack.c.h.b16 %v455
        %v1352 = vunpack.c.l.b16 %v456
        %v1353 = vunpack.c.h.b16 %v456
        %v1354 = vunpack.c.l.b16 %v457
        %v1355 = vunpack.c.h.b16 %v457
        %v1356 = vunpack.c.l.b16 %v458
        %v1357 = vunpack.c.h.b16 %v458
        %v1358 = vunpack.c.l.b16 %v459
        %v1359 = vunpack.c.h.b16 %v459
        %v1360 = vunpack.c.l.b16 %v460
        %v1361 = vunpack.c.h.b16 %v460
        %v1362 = vunpack.c.l.b16 %v461
        %v1363 = vunpack.c.h.b16 %v461
        %v1364 = vunpack.c.l.b16 %v462
        %v1365 = vunpack.c.h.b16 %v462
        %v1366 = vunpack.c.l.b16 %v463
        %v1367 = vunpack.c.h.b16 %v463
        %v1368 = vunpack.c.l.b16 %v464
        %v1369 = vunpack.c.h.b16 %v464
        %v1370 = vunpack.c.l.b16 %v465
        %v1371 = vunpack.c.h.b16 %v465
        %v1372 = vunpack.c.l.b16 %v466
        %v1373 = vunpack.c.h.b16 %v466
        %v1374 = vunpack.c.l.b16 %v467
        %v1375 = vunpack.c.h.b16 %v467
        %v1376 = vunpack.c.l.b16 %v468
        %v1377 = vunpack.c.h.b16 %v468
        %v1378 = vpack.c.b16 %v1288, %v1282
        %v1379 = vpack.c.b16 %v1289, %v1283
        %v1380 = vpack.c.b16 %v1290, %v1284
        %v1381 = vpack.c.b16 %v1291, %v1285
        %v1382 = vpack.c.b16 %v1292, %v1286
        %v1383 = vpack.c.b16 %v1293, %v1287
        %v1384 = vpack.c.b16 %v1300, %v1294
        %v1385 = vpack.c.b16 %v1301, %v1295
        %v1386 = vpack.c.b16 %v1302, %v1296
        %v1387 = vpack.c.b16 %v1303, %v1297
        %v1388 = vpack.c.b16 %v1304, %v1298
        %v1389 = vpack.c.b16 %v1305, %v1299
        %v1390 = vpack.c.b16 %v1312, %v1306
        %v1391 = vpack.c.b16 %v1313, %v1307
        %v1392 = vpack.c.b16 %v1314, %v1308
        %v1393 = vpack.c.b16 %v1315, %v1309
        %v1394 = vpack.c.b16 %v1316, %v1310
        %v1395 = vpack.c.b16 %v1317, %v1311
        %v1396 = vpack.c.b16 %v1324, %v1318
        %v1397 = vpack.c.b16 %v1325, %v1319
        %v1398 = vpack.c.b16 %v1326, %v1320
        %v1399 = vpack.c.b16 %v1327, %v1321
        %v1400 = vpack.c.b16 %v1328, %v1322
        %v1401 = vpack.c.b16 %v1329, %v1323
        %v1402 = vpack.c.b16 %v1336, %v1330
        %v1403 = vpack.c.b16 %v1337, %v1331
        %v1404 = vpack.c.b16 %v1338, %v1332
        %v1405 = vpack.c.b16 %v1339, %v1333
        %v1406 = vpack.c.b16 %v1340, %v1334
        %v1407 = vpack.c.b16 %v1341, %v1335
        %v1408 = vpack.c.b16 %v1348, %v1342
        %v1409 = vpack.c.b16 %v1349, %v1343
        %v1410 = vpack.c.b16 %v1350, %v1344
        %v1411 = vpack.c.b16 %v1351, %v1345
        %v1412 = vpack.c.b16 %v1352, %v1346
        %v1413 = vpack.c.b16 %v1353, %v1347
        %v1414 = vpack.c.b16 %v1360, %v1354
        %v1415 = vpack.c.b16 %v1361, %v1355
        %v1416 = vpack.c.b16 %v1362, %v1356
        %v1417 = vpack.c.b16 %v1363, %v1357
        %v1418 = vpack.c.b16 %v1364, %v1358
        %v1419 = vpack.c.b16 %v1365, %v1359
        %v1420 = vpack.c.b16 %v1372, %v1366
        %v1421 = vpack.c.b16 %v1373, %v1367
        %v1422 = vpack.c.b16 %v1374, %v1368
        %v1423 = vpack.c.b16 %v1375, %v1369
        %v1424 = vpack.c.b16 %v1376, %v1370
        %v1425 = vpack.c.b16 %v1377, %v1371
        %1474 = vmatprep.subr.bf16.mxu0 0
        %1475 = vmatpush1.bf16.msra.mxu0 %v1025
        %1476 = vmatprep.subr.bf16.mxu0 0
        %1477 = vmatpush1.bf16.msra.mxu0 %v1024
        %1478 = vmatprep.subr.bf16.mxu0 0
        %1479 = vmatpush1.bf16.msra.mxu0 %v1023
        %1480 = vmatprep.subr.bf16.mxu0 0
        %1481 = vmatpush1.bf16.msra.mxu0 %v1022
        %1482 = vmatprep.subr.bf16.mxu0 0
        %1483 = vmatpush1.bf16.msra.mxu0 %v1021
        %1484 = vmatprep.subr.bf16.mxu0 0
        %1485 = vmatpush1.bf16.msra.mxu0 %v1020
        %1486 = vmatprep.subr.bf16.mxu0 0
        %1487 = vmatpush1.bf16.msra.mxu0 %v1019
        %1488 = vmatprep.subr.bf16.mxu0 0
        %1489 = vmatpush1.bf16.msra.mxu0 %v1018
        %1490 = vmatprep.subr.bf16.mxu0 0
        %1491 = vmatpush2.bf16.msra.mxu0 %v1033
        %1492 = vmatprep.subr.bf16.mxu0 0
        %1493 = vmatpush2.bf16.msra.mxu0 %v1032
        %1494 = vmatprep.subr.bf16.mxu0 0
        %1495 = vmatpush2.bf16.msra.mxu0 %v1031
        %1496 = vmatprep.subr.bf16.mxu0 0
        %1497 = vmatpush2.bf16.msra.mxu0 %v1030
        %1498 = vmatprep.subr.bf16.mxu0 0
        %1499 = vmatpush2.bf16.msra.mxu0 %v1029
        %1500 = vmatprep.subr.bf16.mxu0 0
        %1501 = vmatpush2.bf16.msra.mxu0 %v1028
        %1502 = vmatprep.subr.bf16.mxu0 0
        %1503 = vmatpush2.bf16.msra.mxu0 %v1027
        %1504 = vmatprep.subr.bf16.mxu0 0
        %1505 = vmatpush2.bf16.msra.mxu0 %v1026
        %1506 = vmatprep.mubr.bf16.mxu0 %v1379
        %1507 = vmatmul.mubr.bf16.gmra.mxu0 %v1378
        %v1508 = vpop.f32.mrf.mxu0
        %v1509 = vadd.f32 %v824, %v1508
        %v1510 = vpop.f32.mrf.mxu0
        %v1511 = vpop.f32.mrf.mxu0
        %v1512 = vadd.f32 %v824, %v1511
        %v1513 = vpop.f32.mrf.mxu0
        %1514 = vmatprep.mubr.bf16.mxu0 %v1385
        %1515 = vmatmul.mubr.bf16.gmra.mxu0 %v1384
        %v1516 = vpop.f32.mrf.mxu0
        %v1517 = vadd.f32 %v824, %v1516
        %v1518 = vpop.f32.mrf.mxu0
        %v1519 = vpop.f32.mrf.mxu0
        %v1520 = vadd.f32 %v824, %v1519
        %v1521 = vpop.f32.mrf.mxu0
        %1522 = vmatprep.mubr.bf16.mxu0 %v1391
        %1523 = vmatmul.mubr.bf16.gmra.mxu0 %v1390
        %v1524 = vpop.f32.mrf.mxu0
        %v1525 = vadd.f32 %v824, %v1524
        %v1526 = vpop.f32.mrf.mxu0
        %v1527 = vpop.f32.mrf.mxu0
        %v1528 = vadd.f32 %v824, %v1527
        %v1529 = vpop.f32.mrf.mxu0
        %1530 = vmatprep.mubr.bf16.mxu0 %v1397
        %1531 = vmatmul.mubr.bf16.gmra.mxu0 %v1396
        %v1532 = vpop.f32.mrf.mxu0
        %v1533 = vadd.f32 %v824, %v1532
        %v1534 = vpop.f32.mrf.mxu0
        %v1535 = vpop.f32.mrf.mxu0
        %v1536 = vadd.f32 %v824, %v1535
        %v1537 = vpop.f32.mrf.mxu0
        %1538 = vmatprep.mubr.bf16.mxu0 %v1403
        %1539 = vmatmul.mubr.bf16.gmra.mxu0 %v1402
        %v1540 = vpop.f32.mrf.mxu0
        %v1541 = vadd.f32 %v824, %v1540
        %v1542 = vpop.f32.mrf.mxu0
        %v1543 = vpop.f32.mrf.mxu0
        %v1544 = vadd.f32 %v824, %v1543
        %v1545 = vpop.f32.mrf.mxu0
        %1546 = vmatprep.mubr.bf16.mxu0 %v1409
        %1547 = vmatmul.mubr.bf16.gmra.mxu0 %v1408
        %v1548 = vpop.f32.mrf.mxu0
        %v1549 = vadd.f32 %v824, %v1548
        %v1550 = vpop.f32.mrf.mxu0
        %v1551 = vpop.f32.mrf.mxu0
        %v1552 = vadd.f32 %v824, %v1551
        %v1553 = vpop.f32.mrf.mxu0
        %1554 = vmatprep.mubr.bf16.mxu0 %v1415
        %1555 = vmatmul.mubr.bf16.gmra.mxu0 %v1414
        %v1556 = vpop.f32.mrf.mxu0
        %v1557 = vadd.f32 %v824, %v1556
        %v1558 = vpop.f32.mrf.mxu0
        %v1559 = vpop.f32.mrf.mxu0
        %v1560 = vadd.f32 %v824, %v1559
        %v1561 = vpop.f32.mrf.mxu0
        %1562 = vmatprep.mubr.bf16.mxu0 %v1421
        %1563 = vmatmul.mubr.bf16.gmra.mxu0 %v1420
        %v1564 = vpop.f32.mrf.mxu0
        %v1565 = vadd.f32 %v824, %v1564
        %v1566 = vpop.f32.mrf.mxu0
        %v1567 = vpop.f32.mrf.mxu0
        %v1568 = vadd.f32 %v824, %v1567
        %v1569 = vpop.f32.mrf.mxu0
        %1570 = vdwg.mxu0
        %1571 = vmatprep.subr.bf16.mxu0 0
        %1572 = vmatpush1.bf16.msra.mxu0 %v1041
        %1573 = vmatprep.subr.bf16.mxu0 0
        %1574 = vmatpush1.bf16.msra.mxu0 %v1040
        %1575 = vmatprep.subr.bf16.mxu0 0
        %1576 = vmatpush1.bf16.msra.mxu0 %v1039
        %1577 = vmatprep.subr.bf16.mxu0 0
        %1578 = vmatpush1.bf16.msra.mxu0 %v1038
        %1579 = vmatprep.subr.bf16.mxu0 0
        %1580 = vmatpush1.bf16.msra.mxu0 %v1037
        %1581 = vmatprep.subr.bf16.mxu0 0
        %1582 = vmatpush1.bf16.msra.mxu0 %v1036
        %1583 = vmatprep.subr.bf16.mxu0 0
        %1584 = vmatpush1.bf16.msra.mxu0 %v1035
        %1585 = vmatprep.subr.bf16.mxu0 0
        %1586 = vmatpush1.bf16.msra.mxu0 %v1034
        %1587 = vmatprep.subr.bf16.mxu0 0
        %1588 = vmatpush2.bf16.msra.mxu0 %v1049
        %1589 = vmatprep.subr.bf16.mxu0 0
        %1590 = vmatpush2.bf16.msra.mxu0 %v1048
        %1591 = vmatprep.subr.bf16.mxu0 0
        %1592 = vmatpush2.bf16.msra.mxu0 %v1047
        %1593 = vmatprep.subr.bf16.mxu0 0
        %1594 = vmatpush2.bf16.msra.mxu0 %v1046
        %1595 = vmatprep.subr.bf16.mxu0 0
        %1596 = vmatpush2.bf16.msra.mxu0 %v1045
        %1597 = vmatprep.subr.bf16.mxu0 0
        %1598 = vmatpush2.bf16.msra.mxu0 %v1044
        %1599 = vmatprep.subr.bf16.mxu0 0
        %1600 = vmatpush2.bf16.msra.mxu0 %v1043
        %1601 = vmatprep.subr.bf16.mxu0 0
        %1602 = vmatpush2.bf16.msra.mxu0 %v1042
        %1603 = vmatprep.mubr.bf16.mxu0 %v1381
        %1604 = vmatmul.mubr.bf16.gmra.mxu0 %v1380
        %v1605 = vpop.f32.mrf.mxu0
        %v1606 = vadd.f32 %v1509, %v1605
        %v1607 = vpop.f32.mrf.mxu0
        %v1608 = vpop.f32.mrf.mxu0
        %v1609 = vadd.f32 %v1512, %v1608
        %v1610 = vpop.f32.mrf.mxu0
        %1611 = vmatprep.mubr.bf16.mxu0 %v1387
        %1612 = vmatmul.mubr.bf16.gmra.mxu0 %v1386
        %v1613 = vpop.f32.mrf.mxu0
        %v1614 = vadd.f32 %v1517, %v1613
        %v1615 = vpop.f32.mrf.mxu0
        %v1616 = vpop.f32.mrf.mxu0
        %v1617 = vadd.f32 %v1520, %v1616
        %v1618 = vpop.f32.mrf.mxu0
        %1619 = vmatprep.mubr.bf16.mxu0 %v1393
        %1620 = vmatmul.mubr.bf16.gmra.mxu0 %v1392
        %v1621 = vpop.f32.mrf.mxu0
        %v1622 = vadd.f32 %v1525, %v1621
        %v1623 = vpop.f32.mrf.mxu0
        %v1624 = vpop.f32.mrf.mxu0
        %v1625 = vadd.f32 %v1528, %v1624
        %v1626 = vpop.f32.mrf.mxu0
        %1627 = vmatprep.mubr.bf16.mxu0 %v1399
        %1628 = vmatmul.mubr.bf16.gmra.mxu0 %v1398
        %v1629 = vpop.f32.mrf.mxu0
        %v1630 = vadd.f32 %v1533, %v1629
        %v1631 = vpop.f32.mrf.mxu0
        %v1632 = vpop.f32.mrf.mxu0
        %v1633 = vadd.f32 %v1536, %v1632
        %v1634 = vpop.f32.mrf.mxu0
        %1635 = vmatprep.mubr.bf16.mxu0 %v1405
        %1636 = vmatmul.mubr.bf16.gmra.mxu0 %v1404
        %v1637 = vpop.f32.mrf.mxu0
        %v1638 = vadd.f32 %v1541, %v1637
        %v1639 = vpop.f32.mrf.mxu0
        %v1640 = vpop.f32.mrf.mxu0
        %v1641 = vadd.f32 %v1544, %v1640
        %v1642 = vpop.f32.mrf.mxu0
        %1643 = vmatprep.mubr.bf16.mxu0 %v1411
        %1644 = vmatmul.mubr.bf16.gmra.mxu0 %v1410
        %v1645 = vpop.f32.mrf.mxu0
        %v1646 = vadd.f32 %v1549, %v1645
        %v1647 = vpop.f32.mrf.mxu0
        %v1648 = vpop.f32.mrf.mxu0
        %v1649 = vadd.f32 %v1552, %v1648
        %v1650 = vpop.f32.mrf.mxu0
        %1651 = vmatprep.mubr.bf16.mxu0 %v1417
        %1652 = vmatmul.mubr.bf16.gmra.mxu0 %v1416
        %v1653 = vpop.f32.mrf.mxu0
        %v1654 = vadd.f32 %v1557, %v1653
        %v1655 = vpop.f32.mrf.mxu0
        %v1656 = vpop.f32.mrf.mxu0
        %v1657 = vadd.f32 %v1560, %v1656
        %v1658 = vpop.f32.mrf.mxu0
        %1659 = vmatprep.mubr.bf16.mxu0 %v1423
        %1660 = vmatmul.mubr.bf16.gmra.mxu0 %v1422
        %v1661 = vpop.f32.mrf.mxu0
        %v1662 = vadd.f32 %v1565, %v1661
        %v1663 = vpop.f32.mrf.mxu0
        %v1664 = vpop.f32.mrf.mxu0
        %v1665 = vadd.f32 %v1568, %v1664
        %v1666 = vpop.f32.mrf.mxu0
        %1667 = vdwg.mxu0
        %1668 = vmatprep.subr.bf16.mxu0 0
        %1669 = vmatpush1.bf16.msra.mxu0 %v1057
        %1670 = vmatprep.subr.bf16.mxu0 0
        %1671 = vmatpush1.bf16.msra.mxu0 %v1056
        %1672 = vmatprep.subr.bf16.mxu0 0
        %1673 = vmatpush1.bf16.msra.mxu0 %v1055
        %1674 = vmatprep.subr.bf16.mxu0 0
        %1675 = vmatpush1.bf16.msra.mxu0 %v1054
        %1676 = vmatprep.subr.bf16.mxu0 0
        %1677 = vmatpush1.bf16.msra.mxu0 %v1053
        %1678 = vmatprep.subr.bf16.mxu0 0
        %1679 = vmatpush1.bf16.msra.mxu0 %v1052
        %1680 = vmatprep.subr.bf16.mxu0 0
        %1681 = vmatpush1.bf16.msra.mxu0 %v1051
        %1682 = vmatprep.subr.bf16.mxu0 0
        %1683 = vmatpush1.bf16.msra.mxu0 %v1050
        %1684 = vmatprep.subr.bf16.mxu0 0
        %1685 = vmatpush2.bf16.msra.mxu0 %v1065
        %1686 = vmatprep.subr.bf16.mxu0 0
        %1687 = vmatpush2.bf16.msra.mxu0 %v1064
        %1688 = vmatprep.subr.bf16.mxu0 0
        %1689 = vmatpush2.bf16.msra.mxu0 %v1063
        %1690 = vmatprep.subr.bf16.mxu0 0
        %1691 = vmatpush2.bf16.msra.mxu0 %v1062
        %1692 = vmatprep.subr.bf16.mxu0 0
        %1693 = vmatpush2.bf16.msra.mxu0 %v1061
        %1694 = vmatprep.subr.bf16.mxu0 0
        %1695 = vmatpush2.bf16.msra.mxu0 %v1060
        %1696 = vmatprep.subr.bf16.mxu0 0
        %1697 = vmatpush2.bf16.msra.mxu0 %v1059
        %1698 = vmatprep.subr.bf16.mxu0 0
        %1699 = vmatpush2.bf16.msra.mxu0 %v1058
        %1700 = vmatprep.mubr.bf16.mxu0 %v1383
        %1701 = vmatmul.mubr.bf16.gmra.mxu0 %v1382
        %v1702 = vpop.f32.mrf.mxu0
        %v1703 = vadd.f32 %v1606, %v1702
        %v1704 = vpop.f32.mrf.mxu0
        %v1705 = vpop.f32.mrf.mxu0
        %v1706 = vadd.f32 %v1609, %v1705
        %v1707 = vpop.f32.mrf.mxu0
        %1708 = vmatprep.mubr.bf16.mxu0 %v1389
        %1709 = vmatmul.mubr.bf16.gmra.mxu0 %v1388
        %v1710 = vpop.f32.mrf.mxu0
        %v1711 = vadd.f32 %v1614, %v1710
        %v1712 = vpop.f32.mrf.mxu0
        %v1713 = vpop.f32.mrf.mxu0
        %v1714 = vadd.f32 %v1617, %v1713
        %v1715 = vpop.f32.mrf.mxu0
        %1716 = vmatprep.mubr.bf16.mxu0 %v1395
        %1717 = vmatmul.mubr.bf16.gmra.mxu0 %v1394
        %v1718 = vpop.f32.mrf.mxu0
        %v1719 = vadd.f32 %v1622, %v1718
        %v1720 = vpop.f32.mrf.mxu0
        %v1721 = vpop.f32.mrf.mxu0
        %v1722 = vadd.f32 %v1625, %v1721
        %v1723 = vpop.f32.mrf.mxu0
        %1724 = vmatprep.mubr.bf16.mxu0 %v1401
        %1725 = vmatmul.mubr.bf16.gmra.mxu0 %v1400
        %v1726 = vpop.f32.mrf.mxu0
        %v1727 = vadd.f32 %v1630, %v1726
        %v1728 = vpop.f32.mrf.mxu0
        %v1729 = vpop.f32.mrf.mxu0
        %v1730 = vadd.f32 %v1633, %v1729
        %v1731 = vpop.f32.mrf.mxu0
        %1732 = vmatprep.mubr.bf16.mxu0 %v1407
        %1733 = vmatmul.mubr.bf16.gmra.mxu0 %v1406
        %v1734 = vpop.f32.mrf.mxu0
        %v1735 = vadd.f32 %v1638, %v1734
        %v1736 = vpop.f32.mrf.mxu0
        %v1737 = vpop.f32.mrf.mxu0
        %v1738 = vadd.f32 %v1641, %v1737
        %v1739 = vpop.f32.mrf.mxu0
        %1740 = vmatprep.mubr.bf16.mxu0 %v1413
        %1741 = vmatmul.mubr.bf16.gmra.mxu0 %v1412
        %v1742 = vpop.f32.mrf.mxu0
        %v1743 = vadd.f32 %v1646, %v1742
        %v1744 = vpop.f32.mrf.mxu0
        %v1745 = vpop.f32.mrf.mxu0
        %v1746 = vadd.f32 %v1649, %v1745
        %v1747 = vpop.f32.mrf.mxu0
        %1748 = vmatprep.mubr.bf16.mxu0 %v1419
        %1749 = vmatmul.mubr.bf16.gmra.mxu0 %v1418
        %v1750 = vpop.f32.mrf.mxu0
        %v1751 = vadd.f32 %v1654, %v1750
        %v1752 = vpop.f32.mrf.mxu0
        %v1753 = vpop.f32.mrf.mxu0
        %v1754 = vadd.f32 %v1657, %v1753
        %v1755 = vpop.f32.mrf.mxu0
        %1756 = vmatprep.mubr.bf16.mxu0 %v1425
        %1757 = vmatmul.mubr.bf16.gmra.mxu0 %v1424
        %v1758 = vpop.f32.mrf.mxu0
        %v1759 = vadd.f32 %v1662, %v1758
        %v1760 = vpop.f32.mrf.mxu0
        %v1761 = vpop.f32.mrf.mxu0
        %v1762 = vadd.f32 %v1665, %v1761
        %v1763 = vpop.f32.mrf.mxu0
        %1764 = vdwg.mxu0
        %1765 = vmatprep.subr.mxu0 0.0
        %1766 = vmatpush1.xpose.msra.mxu0 %v1762
        %1767 = vmatprep.subr.mxu0 0.0
        %1768 = vmatpush1.xpose.msra.mxu0 %v1759
        %1769 = vmatprep.subr.mxu0 0.0
        %1770 = vmatpush1.xpose.msra.mxu0 %v1754
        %1771 = vmatprep.subr.mxu0 0.0
        %1772 = vmatpush1.xpose.msra.mxu0 %v1751
        %1773 = vmatprep.subr.mxu0 0.0
        %1774 = vmatpush1.xpose.msra.mxu0 %v1746
        %1775 = vmatprep.subr.mxu0 0.0
        %1776 = vmatpush1.xpose.msra.mxu0 %v1743
        %1777 = vmatprep.subr.mxu0 0.0
        %1778 = vmatpush1.xpose.msra.mxu0 %v1738
        %1779 = vmatprep.subr.mxu0 0.0
        %1780 = vmatpush1.xpose.msra.mxu0 %v1735
        %1781 = vmatprep.subr.mxu0 0.0
        %1782 = vmatpush1.xpose.msra.mxu0 %v1730
        %1783 = vmatprep.subr.mxu0 0.0
        %1784 = vmatpush1.xpose.msra.mxu0 %v1727
        %1785 = vmatprep.subr.mxu0 0.0
        %1786 = vmatpush1.xpose.msra.mxu0 %v1722
        %1787 = vmatprep.subr.mxu0 0.0
        %1788 = vmatpush1.xpose.msra.mxu0 %v1719
        %1789 = vmatprep.subr.mxu0 0.0
        %1790 = vmatpush1.xpose.msra.mxu0 %v1714
        %1791 = vmatprep.subr.mxu0 0.0
        %1792 = vmatpush1.xpose.msra.mxu0 %v1711
        %1793 = vmatprep.subr.mxu0 0.0
        %1794 = vmatpush1.xpose.msra.mxu0 %v1706
        %1795 = vmatprep.subr.mxu0 0.0
        %1796 = vmatpush1.xpose.msra.mxu0 %v1703
        %1797 = vmatprep.subr.mxu0 0.0
        %1798 = vmatpush2.xpose.msra.mxu0 0.0
        %1799 = vmatprep.subr.mxu0 0.0
        %1800 = vmatpush2.xpose.msra.mxu0 0.0
        %1801 = vmatprep.subr.mxu0 0.0
        %1802 = vmatpush2.xpose.msra.mxu0 0.0
        %1803 = vmatprep.subr.mxu0 0.0
        %1804 = vmatpush2.xpose.msra.mxu0 0.0
        %1805 = vmatprep.subr.mxu0 0.0
        %1806 = vmatpush2.xpose.msra.mxu0 0.0
        %1807 = vmatprep.subr.mxu0 0.0
        %1808 = vmatpush2.xpose.msra.mxu0 0.0
        %1809 = vmatprep.subr.mxu0 0.0
        %1810 = vmatpush2.xpose.msra.mxu0 0.0
        %1811 = vmatprep.subr.mxu0 0.0
        %1812 = vmatpush2.xpose.msra.mxu0 0.0
        %1813 = vmatprep.subr.mxu0 0.0
        %1814 = vmatpush2.xpose.msra.mxu0 0.0
        %1815 = vmatprep.subr.mxu0 0.0
        %1816 = vmatpush2.xpose.msra.mxu0 0.0
        %1817 = vmatprep.subr.mxu0 0.0
        %1818 = vmatpush2.xpose.msra.mxu0 0.0
        %1819 = vmatprep.subr.mxu0 0.0
        %1820 = vmatpush2.xpose.msra.mxu0 0.0
        %1821 = vmatprep.subr.mxu0 0.0
        %1822 = vmatpush2.xpose.msra.mxu0 0.0
        %1823 = vmatprep.subr.mxu0 0.0
        %1824 = vmatpush2.xpose.msra.mxu0 0.0
        %1825 = vmatprep.subr.mxu0 0.0
        %1826 = vmatpush2.xpose.msra.mxu0 0.0
        %1827 = vmatprep.subr.mxu0 0.0
        %1828 = vmatpush2.xpose.msra.mxu0 0.0
        %1829 = vmatprep.mubr.f32.mxu0 0.0
        %1830 = vmatmul.mubr.f32.gmra.mxu0 %v1229
        %v1831 = vpop.f32.mrf.mxu0
        %v1832 = vadd.f32 0.0, %v1831
        %v1833 = vpop.f32.mrf.mxu0
        %1834 = vdwg.mxu0
        %v1835 = vmul.f32 %v1229, %v1229
        %1836 = vadd.xlane.f32.xlu0 %v1835
        %v1837 = vpop.xlane.xlu0 %1836
        %v1838 = vmul.f32 %v1703, %v1703
        %v1839 = vmul.f32 %v1706, %v1706
        %v1840 = vmul.f32 %v1711, %v1711
        %v1841 = vmul.f32 %v1714, %v1714
        %v1842 = vmul.f32 %v1719, %v1719
        %v1843 = vmul.f32 %v1722, %v1722
        %v1844 = vmul.f32 %v1727, %v1727
        %v1845 = vmul.f32 %v1730, %v1730
        %v1846 = vmul.f32 %v1735, %v1735
        %v1847 = vmul.f32 %v1738, %v1738
        %v1848 = vmul.f32 %v1743, %v1743
        %v1849 = vmul.f32 %v1746, %v1746
        %v1850 = vmul.f32 %v1751, %v1751
        %v1851 = vmul.f32 %v1754, %v1754
        %v1852 = vmul.f32 %v1759, %v1759
        %v1853 = vmul.f32 %v1762, %v1762
        %1854 = vadd.xlane.f32.xlu0 %v1838
        %v1855 = vpop.xlane.xlu0 %1854
        %1856 = vadd.xlane.f32.xlu0 %v1839
        %v1857 = vpop.xlane.xlu0 %1856
        %1858 = vadd.xlane.f32.xlu0 %v1840
        %v1859 = vpop.xlane.xlu0 %1858
        %1860 = vadd.xlane.f32.xlu0 %v1841
        %v1861 = vpop.xlane.xlu0 %1860
        %1862 = vadd.xlane.f32.xlu0 %v1842
        %v1863 = vpop.xlane.xlu0 %1862
        %1864 = vadd.xlane.f32.xlu0 %v1843
        %v1865 = vpop.xlane.xlu0 %1864
        %1866 = vadd.xlane.f32.xlu0 %v1844
        %v1867 = vpop.xlane.xlu0 %1866
        %1868 = vadd.xlane.f32.xlu0 %v1845
        %v1869 = vpop.xlane.xlu0 %1868
        %1870 = vadd.xlane.f32.xlu0 %v1846
        %v1871 = vpop.xlane.xlu0 %1870
        %1872 = vadd.xlane.f32.xlu0 %v1847
        %v1873 = vpop.xlane.xlu0 %1872
        %1874 = vadd.xlane.f32.xlu0 %v1848
        %v1875 = vpop.xlane.xlu0 %1874
        %1876 = vadd.xlane.f32.xlu0 %v1849
        %v1877 = vpop.xlane.xlu0 %1876
        %1878 = vadd.xlane.f32.xlu0 %v1850
        %v1879 = vpop.xlane.xlu0 %1878
        %1880 = vadd.xlane.f32.xlu0 %v1851
        %v1881 = vpop.xlane.xlu0 %1880
        %1882 = vadd.xlane.f32.xlu0 %v1852
        %v1883 = vpop.xlane.xlu0 %1882
        %1884 = vadd.xlane.f32.xlu0 %v1853
        %v1885 = vpop.xlane.xlu0 %1884
        %v1886 = vmul.f32 %v1832, 2.0
        %v1887 = vsub.f32 %v1886, %v1837
        %v1904 = vlaneseq
        %v1905 = vand.u32 %v1904, 127
        %v1906 = vlaneseq
        %v1907 = vshrl.u32 %v1906, 7
        %v1908 = vsub.s32 %v1905, %v1907
        %v1909 = vrot.slane %v1855, %v1908
        %v1910 = vadd.s32 %v1905, 4294967288
        %v1911 = vlaneseq
        %v1912 = vshrl.u32 %v1911, 7
        %v1913 = vsub.s32 %v1910, %v1912
        %v1914 = vrot.slane %v1857, %v1913
        %vm1915 = vcmask 130112
        %v1916 = vsel %vm1915, %v1914, %v1909
        %v1917 = vadd.s32 %v1905, 4294967280
        %v1918 = vlaneseq
        %v1919 = vshrl.u32 %v1918, 7
        %v1920 = vsub.s32 %v1917, %v1919
        %v1921 = vrot.slane %v1859, %v1920
        %vm1922 = vcmask 195712
        %v1923 = vsel %vm1922, %v1921, %v1916
        %v1924 = vadd.s32 %v1905, 4294967272
        %v1925 = vlaneseq
        %v1926 = vshrl.u32 %v1925, 7
        %v1927 = vsub.s32 %v1924, %v1926
        %v1928 = vrot.slane %v1861, %v1927
        %vm1929 = vcmask 261312
        %v1930 = vsel %vm1929, %v1928, %v1923
        %v1931 = vadd.s32 %v1905, 4294967264
        %v1932 = vlaneseq
        %v1933 = vshrl.u32 %v1932, 7
        %v1934 = vsub.s32 %v1931, %v1933
        %v1935 = vrot.slane %v1863, %v1934
        %vm1936 = vcmask 326912
        %v1937 = vsel %vm1936, %v1935, %v1930
        %v1938 = vadd.s32 %v1905, 4294967256
        %v1939 = vlaneseq
        %v1940 = vshrl.u32 %v1939, 7
        %v1941 = vsub.s32 %v1938, %v1940
        %v1942 = vrot.slane %v1865, %v1941
        %vm1943 = vcmask 392512
        %v1944 = vsel %vm1943, %v1942, %v1937
        %v1945 = vadd.s32 %v1905, 4294967248
        %v1946 = vlaneseq
        %v1947 = vshrl.u32 %v1946, 7
        %v1948 = vsub.s32 %v1945, %v1947
        %v1949 = vrot.slane %v1867, %v1948
        %vm1950 = vcmask 458112
        %v1951 = vsel %vm1950, %v1949, %v1944
        %v1952 = vadd.s32 %v1905, 4294967240
        %v1953 = vlaneseq
        %v1954 = vshrl.u32 %v1953, 7
        %v1955 = vsub.s32 %v1952, %v1954
        %v1956 = vrot.slane %v1869, %v1955
        %vm1957 = vcmask 523712
        %v1958 = vsel %vm1957, %v1956, %v1951
        %v1959 = vadd.s32 %v1905, 4294967232
        %v1960 = vlaneseq
        %v1961 = vshrl.u32 %v1960, 7
        %v1962 = vsub.s32 %v1959, %v1961
        %v1963 = vrot.slane %v1871, %v1962
        %vm1964 = vcmask 589312
        %v1965 = vsel %vm1964, %v1963, %v1958
        %v1966 = vadd.s32 %v1905, 4294967224
        %v1967 = vlaneseq
        %v1968 = vshrl.u32 %v1967, 7
        %v1969 = vsub.s32 %v1966, %v1968
        %v1970 = vrot.slane %v1873, %v1969
        %vm1971 = vcmask 654912
        %v1972 = vsel %vm1971, %v1970, %v1965
        %v1973 = vadd.s32 %v1905, 4294967216
        %v1974 = vlaneseq
        %v1975 = vshrl.u32 %v1974, 7
        %v1976 = vsub.s32 %v1973, %v1975
        %v1977 = vrot.slane %v1875, %v1976
        %vm1978 = vcmask 720512
        %v1979 = vsel %vm1978, %v1977, %v1972
        %v1980 = vadd.s32 %v1905, 4294967208
        %v1981 = vlaneseq
        %v1982 = vshrl.u32 %v1981, 7
        %v1983 = vsub.s32 %v1980, %v1982
        %v1984 = vrot.slane %v1877, %v1983
        %vm1985 = vcmask 786112
        %v1986 = vsel %vm1985, %v1984, %v1979
        %v1987 = vadd.s32 %v1905, 4294967200
        %v1988 = vlaneseq
        %v1989 = vshrl.u32 %v1988, 7
        %v1990 = vsub.s32 %v1987, %v1989
        %v1991 = vrot.slane %v1879, %v1990
        %vm1992 = vcmask 851712
        %v1993 = vsel %vm1992, %v1991, %v1986
        %v1994 = vadd.s32 %v1905, 4294967192
        %v1995 = vlaneseq
        %v1996 = vshrl.u32 %v1995, 7
        %v1997 = vsub.s32 %v1994, %v1996
        %v1998 = vrot.slane %v1881, %v1997
        %vm1999 = vcmask 917312
        %v2000 = vsel %vm1999, %v1998, %v1993
        %v2001 = vadd.s32 %v1905, 4294967184
        %v2002 = vlaneseq
        %v2003 = vshrl.u32 %v2002, 7
        %v2004 = vsub.s32 %v2001, %v2003
        %v2005 = vrot.slane %v1883, %v2004
        %vm2006 = vcmask 982912
        %v2007 = vsel %vm2006, %v2005, %v2000
        %v2008 = vadd.s32 %v1905, 4294967176
        %v2009 = vlaneseq
        %v2010 = vshrl.u32 %v2009, 7
        %v2011 = vsub.s32 %v2008, %v2010
        %v2012 = vrot.slane %v1885, %v2011
        %vm2013 = vcmask 1048512
        %v2014 = vsel %vm2013, %v2012, %v2007
        %vm2015 = vcmask 1042434
        %v2016 = vsel %vm2015, %v2014, %v2014
        %vm2017 = vcmask 1043459
        %v2018 = vsel %vm2017, %v2014, %v2016
        %vm2019 = vcmask 1044484
        %v2020 = vsel %vm2019, %v2014, %v2018
        %vm2021 = vcmask 1045509
        %v2022 = vsel %vm2021, %v2014, %v2020
        %vm2023 = vcmask 1046534
        %v2024 = vsel %vm2023, %v2014, %v2022
        %vm2025 = vcmask 1047559
        %v2026 = vsel %vm2025, %v2014, %v2024
        %v2028 = vsub.f32 %v1887, %v2026
        %v2029 = vmul.f32 %v2028, %v469
        %2030 = vst [vmem:[%s394] sm:$0xff] %v2029
        %s2031 = sand.u32 %s183, 1
        %s2032 = scalar_lea.sflag [#allocation4], %s2031
        %s2033 = sand.u32 %s183, 1
        %s2034 = smul.addr %s2033, 8
        %s2035 = scalar_lea.vmem [#allocation11], %s2034
        // Predicated region
        $region65: #{tpu_custom_call.1} parent=43 // pred_check
          %p2036 = pneg %p193
        $region66: #{tpu_custom_call.1} parent=43 // pred_check_branch
          %2038 = sbr.rel (%p2036) target = $region68
        $region67: #{tpu_custom_call.1} parent=43 // pred_region
          %s2040 = ssub.s32 128, 128
          %2041 = vsyncadd %s2032, %s2040
          %s2042 = smul.addr %s29, 128
          %s2043 = scalar_lea.hbm %s6, %s2042
          %s2045 = sshll.u32 %s2035, 4
          %s2046 = int_to_ptr.vmem [resolvable:$true] %s2045
          %2048 = dma.vmem_to_hbm [thread:$0]  %s2046, 128, %s2043, %s2032
        $region68: #{tpu_custom_call.1} parent=43 // pred_fallthru
          _
      $region44: #{tpu_custom_call.1} parent=5 // pred_fallthru
        _
      %p2049 = scmp.le.s32.totalorder 2, %s24
      // Predicated region
      $region69: #{tpu_custom_call.1} parent=5 // pred_check
        %p2050 = pneg %p2049
      $region70: #{tpu_custom_call.1} parent=5 // pred_check_branch
        %2052 = sbr.rel (%p2050) target = $region72
      $region71: #{tpu_custom_call.1} parent=5 // pred_region
        %s2053 = ssub.s32 %s24, 2
        // Predicated region
        $region73: #{tpu_custom_call.1} parent=71 // pred_check
          %p2054 = pneg %p199
        $region74: #{tpu_custom_call.1} parent=71 // pred_check_branch
          %2056 = sbr.rel (%p2054) target = $region76
        $region75: #{tpu_custom_call.1} parent=71 // pred_region
          %s2057 = sand.u32 %s184, 1
          %s2058 = scalar_lea.sflag [#allocation4], %s2057
          %s2059 = sand.u32 %s184, 1
          %s2060 = smul.addr %s2059, 8
          %s2061 = scalar_lea.vmem [#allocation11], %s2060
          %2062 = dma.done %s2058, 128
        $region76: #{tpu_custom_call.1} parent=71 // pred_fallthru
          _
      $region72: #{tpu_custom_call.1} parent=5 // pred_fallthru
        _
    $region6: #{tpu_custom_call.1} parent=1 // loop_footer
      %s28 = sadd.s32 1, %s24
    $region7: #{tpu_custom_call.1} parent=1 // loop_footer_branch
      %23 = sbr.rel target = $region3
    $region8: #{tpu_custom_call.1} parent=1 // loop_exit
      _
    %2063 = vsyncpa [#allocation3], 1
    %s2064 = scalar_lea.sflag [#allocation3], 1
    %2065 = vsyncpa %s2064, 1
    %2066 = vsyncpa [#allocation6], 1
    %s2067 = scalar_lea.sflag [#allocation6], 1
    %2068 = vsyncpa %s2067, 1
    %2069 = vsyncpa [#allocation9], 1
    %s2070 = scalar_lea.sflag [#allocation9], 1
    %2071 = vsyncpa %s2070, 1
    %2072 = vsyncpa [#allocation4], 1
    %s2073 = scalar_lea.sflag [#allocation4], 1
    %2074 = vsyncpa %s2073, 1

</llo_original>
